<compile_context>
chip_gen: v7x
topology: tpu7x:2x2x1
jax: 0.10.0
libtpu: 0.0.40
codegen_flags: <defaults>
</compile_context>

<pallas_src>
import jax
import jax.numpy as jnp
from jax import lax
from jax.experimental import pallas as pl
from jax.experimental.pallas import tpu as pltpu


def _round_up(x, m):
    return (x + m - 1) // m * m


def lstm_fc_kernel(tok_ref, emb_proj_ref, w_hh_ref, w_fc_ref, b_fc_ref, out_ref, xp_ref):
    """Fused one-hot gather + LSTM recurrence + final Linear, all in VMEM.

    tok_ref      : VMEM (T*BP, 1) int32 token ids, time-major ((t, b) -> row t*BP + b)
    emb_proj_ref : VMEM (VE, 4H)  embedding @ W_ih^T + (b_ih + b_hh), zero-padded rows >= V
    w_hh_ref     : VMEM (4H, 4H)  rows [0, H) = W_hh^T, rows [H, 4H) = 0
    w_fc_ref     : VMEM (4H, VP)  rows [0, H) cols [0, V) = W_fc^T, rest 0
    b_fc_ref     : VMEM (1, VP)   f32
    out_ref      : VMEM (BP, VP)  f32
    xp_ref       : VMEM scratch (T*BP, 4H) f32 — hoisted per-step input projection
    """
    TBP, G = xp_ref.shape
    BP = out_ref.shape[0]
    T = TBP // BP
    H = G // 4
    VE = emb_proj_ref.shape[0]
    cdt = emb_proj_ref.dtype            # compute dtype for MXU operands (bf16 or f32)

    # ---- fused embedding gather: one-hot (MXU) instead of per-row scalar copies ----
    tok = tok_ref[...]                                          # (TBP, 1) int32
    col = lax.broadcasted_iota(jnp.int32, (TBP, VE), 1)
    onehot = (col == tok).astype(cdt)                           # exact 0/1 in bf16
    xp_ref[...] = jnp.dot(onehot, emb_proj_ref[...],
                          preferred_element_type=jnp.float32)   # (TBP, 4H) f32

    # ---- fully unrolled recurrence: one MXU matmul + 2 full-width EUP ops per step ----
    h = jnp.zeros((BP, G), jnp.float32)      # lanes [0, H) meaningful; rest bounded junk
    c = jnp.zeros((BP, G), jnp.float32)
    for t in range(T):                       # static unroll (T = 2*S = 16)
        xp_t = xp_ref[pl.ds(t * BP, BP), :]                      # (BP, G) f32, re-read
        gates = xp_t + jnp.dot(h.astype(cdt), w_hh_ref[...],
                               preferred_element_type=jnp.float32)
        sig = 0.5 * (jnp.tanh(0.5 * gates) + 1.0)   # sigmoid of all gates, 1 EUP op
        tnh = jnp.tanh(gates)                       # tanh of all gates,    1 EUP op
        # align f/g/o into lanes [0, H) via XLU rolls (i is already there in `sig`)
        f_g = pltpu.roll(sig, 3 * H, axis=1)
        g_g = pltpu.roll(tnh, 2 * H, axis=1)
        o_g = pltpu.roll(sig, 1 * H, axis=1)
        c = f_g * c + sig * g_g                     # 128-lane-wide VPU update
        h = o_g * jnp.tanh(c)

    # ---- final Linear on the last hidden state: lane-dense (BP, VP) store ----
    out_ref[...] = (jnp.dot(h.astype(cdt), w_fc_ref[...],
                            preferred_element_type=jnp.float32)
                    + b_fc_ref[...])


def init_params(key, vocab_size, embedding_dim, hidden_dim):
    """Deterministic init mirroring torch defaults (shapes in torch convention)."""
    k = jax.random.split(key, 7)
    H = hidden_dim
    s = 1.0 / float(jnp.sqrt(jnp.float32(H)))
    return {
        "embedding": jax.random.normal(k[0], (vocab_size, embedding_dim), jnp.float32),
        "w_ih": jax.random.uniform(k[1], (4 * H, embedding_dim), jnp.float32, -s, s),
        "w_hh": jax.random.uniform(k[2], (4 * H, H), jnp.float32, -s, s),
        "b_ih": jax.random.uniform(k[3], (4 * H,), jnp.float32, -s, s),
        "b_hh": jax.random.uniform(k[4], (4 * H,), jnp.float32, -s, s),
        "w_fc": jax.random.uniform(k[5], (vocab_size, H), jnp.float32, -s, s),
        "b_fc": jax.random.uniform(k[6], (vocab_size,), jnp.float32, -s, s),
    }


def word_between_forward(params, x_before, x_after, *, compute_dtype=jnp.bfloat16):
    """x_before, x_after: int32 indices of shape (B, 1, S)."""
    emb = params["embedding"].astype(jnp.float32)                 # (V, E)
    w_ih = params["w_ih"].astype(jnp.float32)                     # (4H, E)
    w_hh = params["w_hh"].astype(jnp.float32)                     # (4H, H)
    bias = (params["b_ih"] + params["b_hh"]).astype(jnp.float32)  # (4H,)
    w_fc = params["w_fc"].astype(jnp.float32)                     # (V, H)
    b_fc = params["b_fc"].astype(jnp.float32)                     # (V,)

    V, _E = emb.shape
    H = w_hh.shape[1]
    G = 4 * H

    B = x_before.shape[0]
    S = x_before.shape[-1]
    T = 2 * S
    BP = _round_up(max(B, 8), 8)          # pad batch to full sublane tile
    VP = _round_up(max(V, 128), 128)      # pad output vocab to full lane tile
    VE = _round_up(max(V, 128), 128)      # pad gather-table rows (one-hot K dim)

    # Token ids: cat(embed(before), embed(after), dim=2).squeeze(1) == embed of the
    # concatenated ids.  Lay them out time-major, batch padded with id 0: (T*BP, 1).
    tokens = jnp.concatenate([x_before, x_after], axis=2)[:, 0, :].astype(jnp.int32)  # (B,T)
    tok_tm = jnp.pad(jnp.transpose(tokens), ((0, 0), (0, BP - B)))                    # (T,BP)
    tok_col = tok_tm.reshape(T * BP, 1)

    # Hoisted input projection folded into the (zero-padded) embedding table:
    #   x_t @ W_ih^T + b  ==  (embedding @ W_ih^T + b)[token]
    emb_proj = emb @ w_ih.T + bias[None, :]                                   # (V, 4H)
    emb_proj_p = (jnp.zeros((VE, G), jnp.float32).at[:V, :].set(emb_proj)
                  .astype(compute_dtype))

    # Zero-padded, pre-transposed recurrent / fc weights (full-lane-width layout).
    w_hh_ext = (jnp.zeros((G, G), jnp.float32).at[:H, :].set(w_hh.T)
                .astype(compute_dtype))                                        # (4H, 4H)
    w_fc_ext = (jnp.zeros((G, VP), jnp.float32).at[:H, :V].set(w_fc.T)
                .astype(compute_dtype))                                        # (4H, VP)
    b_fc_p = jnp.zeros((1, VP), jnp.float32).at[0, :V].set(b_fc)

    vmem = pl.BlockSpec(memory_space=pltpu.MemorySpace.VMEM)
    out = pl.pallas_call(
        lstm_fc_kernel,
        out_shape=jax.ShapeDtypeStruct((BP, VP), jnp.float32),
        in_specs=[vmem, vmem, vmem, vmem, vmem],
        out_specs=vmem,
        scratch_shapes=[pltpu.VMEM((T * BP, G), jnp.float32)],
    )(tok_col, emb_proj_p, w_hh_ext, w_fc_ext, b_fc_p)
    return out[:B, :V]


def reference_forward(params, x_before, x_after):
    """Pure-JAX reference matching torch semantics, for correctness check."""
    emb = params["embedding"]
    eb = jnp.take(emb, x_before, axis=0)
    ea = jnp.take(emb, x_after, axis=0)
    x = jnp.squeeze(jnp.concatenate([eb, ea], axis=2), axis=1)   # (B, T, E)
    B = x.shape[0]
    H = params["w_hh"].shape[1]
    w_ih, w_hh = params["w_ih"], params["w_hh"]
    b = params["b_ih"] + params["b_hh"]

    def step(carry, x_t):
        h, c = carry
        gates = x_t @ w_ih.T + h @ w_hh.T + b
        i = jax.nn.sigmoid(gates[:, :H])
        f = jax.nn.sigmoid(gates[:, H:2 * H])
        g = jnp.tanh(gates[:, 2 * H:3 * H])
        o = jax.nn.sigmoid(gates[:, 3 * H:])
        c = f * c + i * g
        h = o * jnp.tanh(c)
        return (h, c), None

    (h, _), _ = lax.scan(step, (jnp.zeros((B, H)), jnp.zeros((B, H))),
                         jnp.transpose(x, (1, 0, 2)))
    return h @ params["w_fc"].T + params["b_fc"]


if __name__ == "__main__":
    vocab_size, embedding_dim, hidden_dim = 32, 16, 32
    B, S = 2, 8                                    # LSTM sees sequence length 2*S = 16

    key = jax.random.PRNGKey(0)
    kp, kb, ka = jax.random.split(key, 3)
    params = init_params(kp, vocab_size, embedding_dim, hidden_dim)
    x_before = jax.random.randint(kb, (B, 1, S), 0, vocab_size, dtype=jnp.int32)
    x_after = jax.random.randint(ka, (B, 1, S), 0, vocab_size, dtype=jnp.int32)

    ref = reference_forward(params, x_before, x_after)

    # f32-operand path: bit-tight parity with the reference.
    out_f32 = jax.block_until_ready(
        word_between_forward(params, x_before, x_after, compute_dtype=jnp.float32))
    assert out_f32.shape == (B, vocab_size)
    assert jnp.allclose(out_f32, ref, atol=1e-3, rtol=1e-3), \
        float(jnp.max(jnp.abs(out_f32 - ref)))

    # bf16-operand path (default, fast on v6e/v7x MXU): f32 accumulation, looser check.
    out_bf16 = jax.block_until_ready(
        word_between_forward(params, x_before, x_after, compute_dtype=jnp.bfloat16))
    assert out_bf16.shape == (B, vocab_size)
    assert jnp.allclose(out_bf16, ref, atol=2e-2, rtol=2e-2), \
        float(jnp.max(jnp.abs(out_bf16 - ref)))

    print("KERNEL_OK")
</pallas_src>

<mosaic_0001>
module attributes {stable_mosaic.version = 11 : i64} {
  func.func @lstm_fc_kernel(%arg0: memref<128x1xi32, #tpu.memory_space<vmem>>, %arg1: memref<128x128xf32, #tpu.memory_space<vmem>>, %arg2: memref<128x128xf32, #tpu.memory_space<vmem>>, %arg3: memref<128x128xf32, #tpu.memory_space<vmem>>, %arg4: memref<1x128xf32, #tpu.memory_space<vmem>>, %arg5: memref<8x128xf32, #tpu.memory_space<vmem>>, %arg6: memref<128x128xf32, #tpu.memory_space<vmem>>) attributes {dimension_semantics = [], scalar_prefetch = 0 : i64, scratch_operands = 1 : i64, tpu.core_type = #tpu.core_type<tc>} {
    %c0 = arith.constant 0 : index
    %c0_0 = arith.constant 0 : index
    %0 = vector.load %arg0[%c0, %c0_0] : memref<128x1xi32, #tpu.memory_space<vmem>>, vector<128x1xi32>
    %1 = tpu.iota {dimensions = array<i32: 1>} : vector<128x128xi32>
    %2 = vector.broadcast %0 : vector<128x1xi32> to vector<128x128xi32>
    %3 = arith.cmpi eq, %1, %2 : vector<128x128xi32>
    %4 = arith.extui %3 : vector<128x128xi1> to vector<128x128xi32>
    %5 = arith.sitofp %4 : vector<128x128xi32> to vector<128x128xf32>
    %c0_1 = arith.constant 0 : index
    %c0_2 = arith.constant 0 : index
    %6 = vector.load %arg1[%c0_1, %c0_2] : memref<128x128xf32, #tpu.memory_space<vmem>>, vector<128x128xf32>
    %cst = arith.constant dense<0.000000e+00> : vector<128x128xf32>
    %7 = tpu.matmul %5, %6, %cst {dimension_numbers = #tpu.dot_dimension_numbers<[1], [0], [0], [1], [0, 0, 1, 1], [], []>} : vector<128x128xf32>, vector<128x128xf32>, vector<128x128xf32> -> vector<128x128xf32>
    %c0_3 = arith.constant 0 : index
    %c0_4 = arith.constant 0 : index
    %8 = vector.load %arg6[%c0_3, %c0_4] : memref<128x128xf32, #tpu.memory_space<vmem>>, vector<128x128xf32>
    tpu.vector_store %arg6[%c0_3, %c0_4], %7 {strides = array<i32>} : memref<128x128xf32, #tpu.memory_space<vmem>>, vector<128x128xf32>,
    %cst_5 = arith.constant 0.000000e+00 : f32
    %9 = vector.broadcast %cst_5 : f32 to vector<8x128xf32>
    %cst_6 = arith.constant 0.000000e+00 : f32
    %10 = vector.broadcast %cst_6 : f32 to vector<8x128xf32>
    %c0_7 = arith.constant 0 : index
    %c0_8 = arith.constant 0 : index
    %11 = vector.load %arg6[%c0_7, %c0_8] : memref<128x128xf32, #tpu.memory_space<vmem>>, vector<8x128xf32>
    %c0_9 = arith.constant 0 : index
    %c0_10 = arith.constant 0 : index
    %12 = vector.load %arg2[%c0_9, %c0_10] : memref<128x128xf32, #tpu.memory_space<vmem>>, vector<128x128xf32>
    %cst_11 = arith.constant dense<0.000000e+00> : vector<8x128xf32>
    %13 = tpu.matmul %9, %12, %cst_11 {dimension_numbers = #tpu.dot_dimension_numbers<[1], [0], [0], [1], [0, 0, 1, 1], [], []>} : vector<8x128xf32>, vector<128x128xf32>, vector<8x128xf32> -> vector<8x128xf32>
    %14 = arith.addf %11, %13 : vector<8x128xf32>
    %cst_12 = arith.constant 5.000000e-01 : f32
    %15 = vector.broadcast %cst_12 : f32 to vector<8x128xf32>
    %16 = arith.mulf %15, %14 : vector<8x128xf32>
    %17 = math.tanh %16 : vector<8x128xf32>
    %cst_13 = arith.constant 1.000000e+00 : f32
    %18 = vector.broadcast %cst_13 : f32 to vector<8x128xf32>
    %19 = arith.addf %17, %18 : vector<8x128xf32>
    %cst_14 = arith.constant 5.000000e-01 : f32
    %20 = vector.broadcast %cst_14 : f32 to vector<8x128xf32>
    %21 = arith.mulf %20, %19 : vector<8x128xf32>
    %22 = math.tanh %14 : vector<8x128xf32>
    %c96_i32 = arith.constant 96 : i32
    %23 = tpu.dynamic_rotate %21 by %c96_i32 dim 1 : vector<8x128xf32>, i32 -> vector<8x128xf32>
    %c64_i32 = arith.constant 64 : i32
    %24 = tpu.dynamic_rotate %22 by %c64_i32 dim 1 : vector<8x128xf32>, i32 -> vector<8x128xf32>
    %c32_i32 = arith.constant 32 : i32
    %25 = tpu.dynamic_rotate %21 by %c32_i32 dim 1 : vector<8x128xf32>, i32 -> vector<8x128xf32>
    %26 = arith.mulf %23, %10 : vector<8x128xf32>
    %27 = arith.mulf %21, %24 : vector<8x128xf32>
    %28 = arith.addf %26, %27 : vector<8x128xf32>
    %29 = math.tanh %28 : vector<8x128xf32>
    %30 = arith.mulf %25, %29 : vector<8x128xf32>
    %c8 = arith.constant 8 : index
    %c0_15 = arith.constant 0 : index
    %31 = vector.load %arg6[%c8, %c0_15] : memref<128x128xf32, #tpu.memory_space<vmem>>, vector<8x128xf32>
    %c0_16 = arith.constant 0 : index
    %c0_17 = arith.constant 0 : index
    %32 = vector.load %arg2[%c0_16, %c0_17] : memref<128x128xf32, #tpu.memory_space<vmem>>, vector<128x128xf32>
    %cst_18 = arith.constant dense<0.000000e+00> : vector<8x128xf32>
    %33 = tpu.matmul %30, %32, %cst_18 {dimension_numbers = #tpu.dot_dimension_numbers<[1], [0], [0], [1], [0, 0, 1, 1], [], []>} : vector<8x128xf32>, vector<128x128xf32>, vector<8x128xf32> -> vector<8x128xf32>
    %34 = arith.addf %31, %33 : vector<8x128xf32>
    %cst_19 = arith.constant 5.000000e-01 : f32
    %35 = vector.broadcast %cst_19 : f32 to vector<8x128xf32>
    %36 = arith.mulf %35, %34 : vector<8x128xf32>
    %37 = math.tanh %36 : vector<8x128xf32>
    %cst_20 = arith.constant 1.000000e+00 : f32
    %38 = vector.broadcast %cst_20 : f32 to vector<8x128xf32>
    %39 = arith.addf %37, %38 : vector<8x128xf32>
    %cst_21 = arith.constant 5.000000e-01 : f32
    %40 = vector.broadcast %cst_21 : f32 to vector<8x128xf32>
    %41 = arith.mulf %40, %39 : vector<8x128xf32>
    %42 = math.tanh %34 : vector<8x128xf32>
    %c96_i32_22 = arith.constant 96 : i32
    %43 = tpu.dynamic_rotate %41 by %c96_i32_22 dim 1 : vector<8x128xf32>, i32 -> vector<8x128xf32>
    %c64_i32_23 = arith.constant 64 : i32
    %44 = tpu.dynamic_rotate %42 by %c64_i32_23 dim 1 : vector<8x128xf32>, i32 -> vector<8x128xf32>
    %c32_i32_24 = arith.constant 32 : i32
    %45 = tpu.dynamic_rotate %41 by %c32_i32_24 dim 1 : vector<8x128xf32>, i32 -> vector<8x128xf32>
    %46 = arith.mulf %43, %28 : vector<8x128xf32>
    %47 = arith.mulf %41, %44 : vector<8x128xf32>
    %48 = arith.addf %46, %47 : vector<8x128xf32>
    %49 = math.tanh %48 : vector<8x128xf32>
    %50 = arith.mulf %45, %49 : vector<8x128xf32>
    %c16 = arith.constant 16 : index
    %c0_25 = arith.constant 0 : index
    %51 = vector.load %arg6[%c16, %c0_25] : memref<128x128xf32, #tpu.memory_space<vmem>>, vector<8x128xf32>
    %c0_26 = arith.constant 0 : index
    %c0_27 = arith.constant 0 : index
    %52 = vector.load %arg2[%c0_26, %c0_27] : memref<128x128xf32, #tpu.memory_space<vmem>>, vector<128x128xf32>
    %cst_28 = arith.constant dense<0.000000e+00> : vector<8x128xf32>
    %53 = tpu.matmul %50, %52, %cst_28 {dimension_numbers = #tpu.dot_dimension_numbers<[1], [0], [0], [1], [0, 0, 1, 1], [], []>} : vector<8x128xf32>, vector<128x128xf32>, vector<8x128xf32> -> vector<8x128xf32>
    %54 = arith.addf %51, %53 : vector<8x128xf32>
    %cst_29 = arith.constant 5.000000e-01 : f32
    %55 = vector.broadcast %cst_29 : f32 to vector<8x128xf32>
    %56 = arith.mulf %55, %54 : vector<8x128xf32>
    %57 = math.tanh %56 : vector<8x128xf32>
    %cst_30 = arith.constant 1.000000e+00 : f32
    %58 = vector.broadcast %cst_30 : f32 to vector<8x128xf32>
    %59 = arith.addf %57, %58 : vector<8x128xf32>
    %cst_31 = arith.constant 5.000000e-01 : f32
    %60 = vector.broadcast %cst_31 : f32 to vector<8x128xf32>
    %61 = arith.mulf %60, %59 : vector<8x128xf32>
    %62 = math.tanh %54 : vector<8x128xf32>
    %c96_i32_32 = arith.constant 96 : i32
    %63 = tpu.dynamic_rotate %61 by %c96_i32_32 dim 1 : vector<8x128xf32>, i32 -> vector<8x128xf32>
    %c64_i32_33 = arith.constant 64 : i32
    %64 = tpu.dynamic_rotate %62 by %c64_i32_33 dim 1 : vector<8x128xf32>, i32 -> vector<8x128xf32>
    %c32_i32_34 = arith.constant 32 : i32
    %65 = tpu.dynamic_rotate %61 by %c32_i32_34 dim 1 : vector<8x128xf32>, i32 -> vector<8x128xf32>
    %66 = arith.mulf %63, %48 : vector<8x128xf32>
    %67 = arith.mulf %61, %64 : vector<8x128xf32>
    %68 = arith.addf %66, %67 : vector<8x128xf32>
    %69 = math.tanh %68 : vector<8x128xf32>
    %70 = arith.mulf %65, %69 : vector<8x128xf32>
    %c24 = arith.constant 24 : index
    %c0_35 = arith.constant 0 : index
    %71 = vector.load %arg6[%c24, %c0_35] : memref<128x128xf32, #tpu.memory_space<vmem>>, vector<8x128xf32>
    %c0_36 = arith.constant 0 : index
    %c0_37 = arith.constant 0 : index
    %72 = vector.load %arg2[%c0_36, %c0_37] : memref<128x128xf32, #tpu.memory_space<vmem>>, vector<128x128xf32>
    %cst_38 = arith.constant dense<0.000000e+00> : vector<8x128xf32>
    %73 = tpu.matmul %70, %72, %cst_38 {dimension_numbers = #tpu.dot_dimension_numbers<[1], [0], [0], [1], [0, 0, 1, 1], [], []>} : vector<8x128xf32>, vector<128x128xf32>, vector<8x128xf32> -> vector<8x128xf32>
    %74 = arith.addf %71, %73 : vector<8x128xf32>
    %cst_39 = arith.constant 5.000000e-01 : f32
    %75 = vector.broadcast %cst_39 : f32 to vector<8x128xf32>
    %76 = arith.mulf %75, %74 : vector<8x128xf32>
    %77 = math.tanh %76 : vector<8x128xf32>
    %cst_40 = arith.constant 1.000000e+00 : f32
    %78 = vector.broadcast %cst_40 : f32 to vector<8x128xf32>
    %79 = arith.addf %77, %78 : vector<8x128xf32>
    %cst_41 = arith.constant 5.000000e-01 : f32
    %80 = vector.broadcast %cst_41 : f32 to vector<8x128xf32>
    %81 = arith.mulf %80, %79 : vector<8x128xf32>
    %82 = math.tanh %74 : vector<8x128xf32>
    %c96_i32_42 = arith.constant 96 : i32
    %83 = tpu.dynamic_rotate %81 by %c96_i32_42 dim 1 : vector<8x128xf32>, i32 -> vector<8x128xf32>
    %c64_i32_43 = arith.constant 64 : i32
    %84 = tpu.dynamic_rotate %82 by %c64_i32_43 dim 1 : vector<8x128xf32>, i32 -> vector<8x128xf32>
    %c32_i32_44 = arith.constant 32 : i32
    %85 = tpu.dynamic_rotate %81 by %c32_i32_44 dim 1 : vector<8x128xf32>, i32 -> vector<8x128xf32>
    %86 = arith.mulf %83, %68 : vector<8x128xf32>
    %87 = arith.mulf %81, %84 : vector<8x128xf32>
    %88 = arith.addf %86, %87 : vector<8x128xf32>
    %89 = math.tanh %88 : vector<8x128xf32>
    %90 = arith.mulf %85, %89 : vector<8x128xf32>
    %c32 = arith.constant 32 : index
    %c0_45 = arith.constant 0 : index
    %91 = vector.load %arg6[%c32, %c0_45] : memref<128x128xf32, #tpu.memory_space<vmem>>, vector<8x128xf32>
    %c0_46 = arith.constant 0 : index
    %c0_47 = arith.constant 0 : index
    %92 = vector.load %arg2[%c0_46, %c0_47] : memref<128x128xf32, #tpu.memory_space<vmem>>, vector<128x128xf32>
    %cst_48 = arith.constant dense<0.000000e+00> : vector<8x128xf32>
    %93 = tpu.matmul %90, %92, %cst_48 {dimension_numbers = #tpu.dot_dimension_numbers<[1], [0], [0], [1], [0, 0, 1, 1], [], []>} : vector<8x128xf32>, vector<128x128xf32>, vector<8x128xf32> -> vector<8x128xf32>
    %94 = arith.addf %91, %93 : vector<8x128xf32>
    %cst_49 = arith.constant 5.000000e-01 : f32
    %95 = vector.broadcast %cst_49 : f32 to vector<8x128xf32>
    %96 = arith.mulf %95, %94 : vector<8x128xf32>
    %97 = math.tanh %96 : vector<8x128xf32>
    %cst_50 = arith.constant 1.000000e+00 : f32
    %98 = vector.broadcast %cst_50 : f32 to vector<8x128xf32>
    %99 = arith.addf %97, %98 : vector<8x128xf32>
    %cst_51 = arith.constant 5.000000e-01 : f32
    %100 = vector.broadcast %cst_51 : f32 to vector<8x128xf32>
    %101 = arith.mulf %100, %99 : vector<8x128xf32>
    %102 = math.tanh %94 : vector<8x128xf32>
    %c96_i32_52 = arith.constant 96 : i32
    %103 = tpu.dynamic_rotate %101 by %c96_i32_52 dim 1 : vector<8x128xf32>, i32 -> vector<8x128xf32>
    %c64_i32_53 = arith.constant 64 : i32
    %104 = tpu.dynamic_rotate %102 by %c64_i32_53 dim 1 : vector<8x128xf32>, i32 -> vector<8x128xf32>
    %c32_i32_54 = arith.constant 32 : i32
    %105 = tpu.dynamic_rotate %101 by %c32_i32_54 dim 1 : vector<8x128xf32>, i32 -> vector<8x128xf32>
    %106 = arith.mulf %103, %88 : vector<8x128xf32>
    %107 = arith.mulf %101, %104 : vector<8x128xf32>
    %108 = arith.addf %106, %107 : vector<8x128xf32>
    %109 = math.tanh %108 : vector<8x128xf32>
    %110 = arith.mulf %105, %109 : vector<8x128xf32>
    %c40 = arith.constant 40 : index
    %c0_55 = arith.constant 0 : index
    %111 = vector.load %arg6[%c40, %c0_55] : memref<128x128xf32, #tpu.memory_space<vmem>>, vector<8x128xf32>
    %c0_56 = arith.constant 0 : index
    %c0_57 = arith.constant 0 : index
    %112 = vector.load %arg2[%c0_56, %c0_57] : memref<128x128xf32, #tpu.memory_space<vmem>>, vector<128x128xf32>
    %cst_58 = arith.constant dense<0.000000e+00> : vector<8x128xf32>
    %113 = tpu.matmul %110, %112, %cst_58 {dimension_numbers = #tpu.dot_dimension_numbers<[1], [0], [0], [1], [0, 0, 1, 1], [], []>} : vector<8x128xf32>, vector<128x128xf32>, vector<8x128xf32> -> vector<8x128xf32>
    %114 = arith.addf %111, %113 : vector<8x128xf32>
    %cst_59 = arith.constant 5.000000e-01 : f32
    %115 = vector.broadcast %cst_59 : f32 to vector<8x128xf32>
    %116 = arith.mulf %115, %114 : vector<8x128xf32>
    %117 = math.tanh %116 : vector<8x128xf32>
    %cst_60 = arith.constant 1.000000e+00 : f32
    %118 = vector.broadcast %cst_60 : f32 to vector<8x128xf32>
    %119 = arith.addf %117, %118 : vector<8x128xf32>
    %cst_61 = arith.constant 5.000000e-01 : f32
    %120 = vector.broadcast %cst_61 : f32 to vector<8x128xf32>
    %121 = arith.mulf %120, %119 : vector<8x128xf32>
    %122 = math.tanh %114 : vector<8x128xf32>
    %c96_i32_62 = arith.constant 96 : i32
    %123 = tpu.dynamic_rotate %121 by %c96_i32_62 dim 1 : vector<8x128xf32>, i32 -> vector<8x128xf32>
    %c64_i32_63 = arith.constant 64 : i32
    %124 = tpu.dynamic_rotate %122 by %c64_i32_63 dim 1 : vector<8x128xf32>, i32 -> vector<8x128xf32>
    %c32_i32_64 = arith.constant 32 : i32
    %125 = tpu.dynamic_rotate %121 by %c32_i32_64 dim 1 : vector<8x128xf32>, i32 -> vector<8x128xf32>
    %126 = arith.mulf %123, %108 : vector<8x128xf32>
    %127 = arith.mulf %121, %124 : vector<8x128xf32>
    %128 = arith.addf %126, %127 : vector<8x128xf32>
    %129 = math.tanh %128 : vector<8x128xf32>
    %130 = arith.mulf %125, %129 : vector<8x128xf32>
    %c48 = arith.constant 48 : index
    %c0_65 = arith.constant 0 : index
    %131 = vector.load %arg6[%c48, %c0_65] : memref<128x128xf32, #tpu.memory_space<vmem>>, vector<8x128xf32>
    %c0_66 = arith.constant 0 : index
    %c0_67 = arith.constant 0 : index
    %132 = vector.load %arg2[%c0_66, %c0_67] : memref<128x128xf32, #tpu.memory_space<vmem>>, vector<128x128xf32>
    %cst_68 = arith.constant dense<0.000000e+00> : vector<8x128xf32>
    %133 = tpu.matmul %130, %132, %cst_68 {dimension_numbers = #tpu.dot_dimension_numbers<[1], [0], [0], [1], [0, 0, 1, 1], [], []>} : vector<8x128xf32>, vector<128x128xf32>, vector<8x128xf32> -> vector<8x128xf32>
    %134 = arith.addf %131, %133 : vector<8x128xf32>
    %cst_69 = arith.constant 5.000000e-01 : f32
    %135 = vector.broadcast %cst_69 : f32 to vector<8x128xf32>
    %136 = arith.mulf %135, %134 : vector<8x128xf32>
    %137 = math.tanh %136 : vector<8x128xf32>
    %cst_70 = arith.constant 1.000000e+00 : f32
    %138 = vector.broadcast %cst_70 : f32 to vector<8x128xf32>
    %139 = arith.addf %137, %138 : vector<8x128xf32>
    %cst_71 = arith.constant 5.000000e-01 : f32
    %140 = vector.broadcast %cst_71 : f32 to vector<8x128xf32>
    %141 = arith.mulf %140, %139 : vector<8x128xf32>
    %142 = math.tanh %134 : vector<8x128xf32>
    %c96_i32_72 = arith.constant 96 : i32
    %143 = tpu.dynamic_rotate %141 by %c96_i32_72 dim 1 : vector<8x128xf32>, i32 -> vector<8x128xf32>
    %c64_i32_73 = arith.constant 64 : i32
    %144 = tpu.dynamic_rotate %142 by %c64_i32_73 dim 1 : vector<8x128xf32>, i32 -> vector<8x128xf32>
    %c32_i32_74 = arith.constant 32 : i32
    %145 = tpu.dynamic_rotate %141 by %c32_i32_74 dim 1 : vector<8x128xf32>, i32 -> vector<8x128xf32>
    %146 = arith.mulf %143, %128 : vector<8x128xf32>
    %147 = arith.mulf %141, %144 : vector<8x128xf32>
    %148 = arith.addf %146, %147 : vector<8x128xf32>
    %149 = math.tanh %148 : vector<8x128xf32>
    %150 = arith.mulf %145, %149 : vector<8x128xf32>
    %c56 = arith.constant 56 : index
    %c0_75 = arith.constant 0 : index
    %151 = vector.load %arg6[%c56, %c0_75] : memref<128x128xf32, #tpu.memory_space<vmem>>, vector<8x128xf32>
    %c0_76 = arith.constant 0 : index
    %c0_77 = arith.constant 0 : index
    %152 = vector.load %arg2[%c0_76, %c0_77] : memref<128x128xf32, #tpu.memory_space<vmem>>, vector<128x128xf32>
    %cst_78 = arith.constant dense<0.000000e+00> : vector<8x128xf32>
    %153 = tpu.matmul %150, %152, %cst_78 {dimension_numbers = #tpu.dot_dimension_numbers<[1], [0], [0], [1], [0, 0, 1, 1], [], []>} : vector<8x128xf32>, vector<128x128xf32>, vector<8x128xf32> -> vector<8x128xf32>
    %154 = arith.addf %151, %153 : vector<8x128xf32>
    %cst_79 = arith.constant 5.000000e-01 : f32
    %155 = vector.broadcast %cst_79 : f32 to vector<8x128xf32>
    %156 = arith.mulf %155, %154 : vector<8x128xf32>
    %157 = math.tanh %156 : vector<8x128xf32>
    %cst_80 = arith.constant 1.000000e+00 : f32
    %158 = vector.broadcast %cst_80 : f32 to vector<8x128xf32>
    %159 = arith.addf %157, %158 : vector<8x128xf32>
    %cst_81 = arith.constant 5.000000e-01 : f32
    %160 = vector.broadcast %cst_81 : f32 to vector<8x128xf32>
    %161 = arith.mulf %160, %159 : vector<8x128xf32>
    %162 = math.tanh %154 : vector<8x128xf32>
    %c96_i32_82 = arith.constant 96 : i32
    %163 = tpu.dynamic_rotate %161 by %c96_i32_82 dim 1 : vector<8x128xf32>, i32 -> vector<8x128xf32>
    %c64_i32_83 = arith.constant 64 : i32
    %164 = tpu.dynamic_rotate %162 by %c64_i32_83 dim 1 : vector<8x128xf32>, i32 -> vector<8x128xf32>
    %c32_i32_84 = arith.constant 32 : i32
    %165 = tpu.dynamic_rotate %161 by %c32_i32_84 dim 1 : vector<8x128xf32>, i32 -> vector<8x128xf32>
    %166 = arith.mulf %163, %148 : vector<8x128xf32>
    %167 = arith.mulf %161, %164 : vector<8x128xf32>
    %168 = arith.addf %166, %167 : vector<8x128xf32>
    %169 = math.tanh %168 : vector<8x128xf32>
    %170 = arith.mulf %165, %169 : vector<8x128xf32>
    %c64 = arith.constant 64 : index
    %c0_85 = arith.constant 0 : index
    %171 = vector.load %arg6[%c64, %c0_85] : memref<128x128xf32, #tpu.memory_space<vmem>>, vector<8x128xf32>
    %c0_86 = arith.constant 0 : index
    %c0_87 = arith.constant 0 : index
    %172 = vector.load %arg2[%c0_86, %c0_87] : memref<128x128xf32, #tpu.memory_space<vmem>>, vector<128x128xf32>
    %cst_88 = arith.constant dense<0.000000e+00> : vector<8x128xf32>
    %173 = tpu.matmul %170, %172, %cst_88 {dimension_numbers = #tpu.dot_dimension_numbers<[1], [0], [0], [1], [0, 0, 1, 1], [], []>} : vector<8x128xf32>, vector<128x128xf32>, vector<8x128xf32> -> vector<8x128xf32>
    %174 = arith.addf %171, %173 : vector<8x128xf32>
    %cst_89 = arith.constant 5.000000e-01 : f32
    %175 = vector.broadcast %cst_89 : f32 to vector<8x128xf32>
    %176 = arith.mulf %175, %174 : vector<8x128xf32>
    %177 = math.tanh %176 : vector<8x128xf32>
    %cst_90 = arith.constant 1.000000e+00 : f32
    %178 = vector.broadcast %cst_90 : f32 to vector<8x128xf32>
    %179 = arith.addf %177, %178 : vector<8x128xf32>
    %cst_91 = arith.constant 5.000000e-01 : f32
    %180 = vector.broadcast %cst_91 : f32 to vector<8x128xf32>
    %181 = arith.mulf %180, %179 : vector<8x128xf32>
    %182 = math.tanh %174 : vector<8x128xf32>
    %c96_i32_92 = arith.constant 96 : i32
    %183 = tpu.dynamic_rotate %181 by %c96_i32_92 dim 1 : vector<8x128xf32>, i32 -> vector<8x128xf32>
    %c64_i32_93 = arith.constant 64 : i32
    %184 = tpu.dynamic_rotate %182 by %c64_i32_93 dim 1 : vector<8x128xf32>, i32 -> vector<8x128xf32>
    %c32_i32_94 = arith.constant 32 : i32
    %185 = tpu.dynamic_rotate %181 by %c32_i32_94 dim 1 : vector<8x128xf32>, i32 -> vector<8x128xf32>
    %186 = arith.mulf %183, %168 : vector<8x128xf32>
    %187 = arith.mulf %181, %184 : vector<8x128xf32>
    %188 = arith.addf %186, %187 : vector<8x128xf32>
    %189 = math.tanh %188 : vector<8x128xf32>
    %190 = arith.mulf %185, %189 : vector<8x128xf32>
    %c72 = arith.constant 72 : index
    %c0_95 = arith.constant 0 : index
    %191 = vector.load %arg6[%c72, %c0_95] : memref<128x128xf32, #tpu.memory_space<vmem>>, vector<8x128xf32>
    %c0_96 = arith.constant 0 : index
    %c0_97 = arith.constant 0 : index
    %192 = vector.load %arg2[%c0_96, %c0_97] : memref<128x128xf32, #tpu.memory_space<vmem>>, vector<128x128xf32>
    %cst_98 = arith.constant dense<0.000000e+00> : vector<8x128xf32>
    %193 = tpu.matmul %190, %192, %cst_98 {dimension_numbers = #tpu.dot_dimension_numbers<[1], [0], [0], [1], [0, 0, 1, 1], [], []>} : vector<8x128xf32>, vector<128x128xf32>, vector<8x128xf32> -> vector<8x128xf32>
    %194 = arith.addf %191, %193 : vector<8x128xf32>
    %cst_99 = arith.constant 5.000000e-01 : f32
    %195 = vector.broadcast %cst_99 : f32 to vector<8x128xf32>
    %196 = arith.mulf %195, %194 : vector<8x128xf32>
    %197 = math.tanh %196 : vector<8x128xf32>
    %cst_100 = arith.constant 1.000000e+00 : f32
    %198 = vector.broadcast %cst_100 : f32 to vector<8x128xf32>
    %199 = arith.addf %197, %198 : vector<8x128xf32>
    %cst_101 = arith.constant 5.000000e-01 : f32
    %200 = vector.broadcast %cst_101 : f32 to vector<8x128xf32>
    %201 = arith.mulf %200, %199 : vector<8x128xf32>
    %202 = math.tanh %194 : vector<8x128xf32>
    %c96_i32_102 = arith.constant 96 : i32
    %203 = tpu.dynamic_rotate %201 by %c96_i32_102 dim 1 : vector<8x128xf32>, i32 -> vector<8x128xf32>
    %c64_i32_103 = arith.constant 64 : i32
    %204 = tpu.dynamic_rotate %202 by %c64_i32_103 dim 1 : vector<8x128xf32>, i32 -> vector<8x128xf32>
    %c32_i32_104 = arith.constant 32 : i32
    %205 = tpu.dynamic_rotate %201 by %c32_i32_104 dim 1 : vector<8x128xf32>, i32 -> vector<8x128xf32>
    %206 = arith.mulf %203, %188 : vector<8x128xf32>
    %207 = arith.mulf %201, %204 : vector<8x128xf32>
    %208 = arith.addf %206, %207 : vector<8x128xf32>
    %209 = math.tanh %208 : vector<8x128xf32>
    %210 = arith.mulf %205, %209 : vector<8x128xf32>
    %c80 = arith.constant 80 : index
    %c0_105 = arith.constant 0 : index
    %211 = vector.load %arg6[%c80, %c0_105] : memref<128x128xf32, #tpu.memory_space<vmem>>, vector<8x128xf32>
    %c0_106 = arith.constant 0 : index
    %c0_107 = arith.constant 0 : index
    %212 = vector.load %arg2[%c0_106, %c0_107] : memref<128x128xf32, #tpu.memory_space<vmem>>, vector<128x128xf32>
    %cst_108 = arith.constant dense<0.000000e+00> : vector<8x128xf32>
    %213 = tpu.matmul %210, %212, %cst_108 {dimension_numbers = #tpu.dot_dimension_numbers<[1], [0], [0], [1], [0, 0, 1, 1], [], []>} : vector<8x128xf32>, vector<128x128xf32>, vector<8x128xf32> -> vector<8x128xf32>
    %214 = arith.addf %211, %213 : vector<8x128xf32>
    %cst_109 = arith.constant 5.000000e-01 : f32
    %215 = vector.broadcast %cst_109 : f32 to vector<8x128xf32>
    %216 = arith.mulf %215, %214 : vector<8x128xf32>
    %217 = math.tanh %216 : vector<8x128xf32>
    %cst_110 = arith.constant 1.000000e+00 : f32
    %218 = vector.broadcast %cst_110 : f32 to vector<8x128xf32>
    %219 = arith.addf %217, %218 : vector<8x128xf32>
    %cst_111 = arith.constant 5.000000e-01 : f32
    %220 = vector.broadcast %cst_111 : f32 to vector<8x128xf32>
    %221 = arith.mulf %220, %219 : vector<8x128xf32>
    %222 = math.tanh %214 : vector<8x128xf32>
    %c96_i32_112 = arith.constant 96 : i32
    %223 = tpu.dynamic_rotate %221 by %c96_i32_112 dim 1 : vector<8x128xf32>, i32 -> vector<8x128xf32>
    %c64_i32_113 = arith.constant 64 : i32
    %224 = tpu.dynamic_rotate %222 by %c64_i32_113 dim 1 : vector<8x128xf32>, i32 -> vector<8x128xf32>
    %c32_i32_114 = arith.constant 32 : i32
    %225 = tpu.dynamic_rotate %221 by %c32_i32_114 dim 1 : vector<8x128xf32>, i32 -> vector<8x128xf32>
    %226 = arith.mulf %223, %208 : vector<8x128xf32>
    %227 = arith.mulf %221, %224 : vector<8x128xf32>
    %228 = arith.addf %226, %227 : vector<8x128xf32>
    %229 = math.tanh %228 : vector<8x128xf32>
    %230 = arith.mulf %225, %229 : vector<8x128xf32>
    %c88 = arith.constant 88 : index
    %c0_115 = arith.constant 0 : index
    %231 = vector.load %arg6[%c88, %c0_115] : memref<128x128xf32, #tpu.memory_space<vmem>>, vector<8x128xf32>
    %c0_116 = arith.constant 0 : index
    %c0_117 = arith.constant 0 : index
    %232 = vector.load %arg2[%c0_116, %c0_117] : memref<128x128xf32, #tpu.memory_space<vmem>>, vector<128x128xf32>
    %cst_118 = arith.constant dense<0.000000e+00> : vector<8x128xf32>
    %233 = tpu.matmul %230, %232, %cst_118 {dimension_numbers = #tpu.dot_dimension_numbers<[1], [0], [0], [1], [0, 0, 1, 1], [], []>} : vector<8x128xf32>, vector<128x128xf32>, vector<8x128xf32> -> vector<8x128xf32>
    %234 = arith.addf %231, %233 : vector<8x128xf32>
    %cst_119 = arith.constant 5.000000e-01 : f32
    %235 = vector.broadcast %cst_119 : f32 to vector<8x128xf32>
    %236 = arith.mulf %235, %234 : vector<8x128xf32>
    %237 = math.tanh %236 : vector<8x128xf32>
    %cst_120 = arith.constant 1.000000e+00 : f32
    %238 = vector.broadcast %cst_120 : f32 to vector<8x128xf32>
    %239 = arith.addf %237, %238 : vector<8x128xf32>
    %cst_121 = arith.constant 5.000000e-01 : f32
    %240 = vector.broadcast %cst_121 : f32 to vector<8x128xf32>
    %241 = arith.mulf %240, %239 : vector<8x128xf32>
    %242 = math.tanh %234 : vector<8x128xf32>
    %c96_i32_122 = arith.constant 96 : i32
    %243 = tpu.dynamic_rotate %241 by %c96_i32_122 dim 1 : vector<8x128xf32>, i32 -> vector<8x128xf32>
    %c64_i32_123 = arith.constant 64 : i32
    %244 = tpu.dynamic_rotate %242 by %c64_i32_123 dim 1 : vector<8x128xf32>, i32 -> vector<8x128xf32>
    %c32_i32_124 = arith.constant 32 : i32
    %245 = tpu.dynamic_rotate %241 by %c32_i32_124 dim 1 : vector<8x128xf32>, i32 -> vector<8x128xf32>
    %246 = arith.mulf %243, %228 : vector<8x128xf32>
    %247 = arith.mulf %241, %244 : vector<8x128xf32>
    %248 = arith.addf %246, %247 : vector<8x128xf32>
    %249 = math.tanh %248 : vector<8x128xf32>
    %250 = arith.mulf %245, %249 : vector<8x128xf32>
    %c96 = arith.constant 96 : index
    %c0_125 = arith.constant 0 : index
    %251 = vector.load %arg6[%c96, %c0_125] : memref<128x128xf32, #tpu.memory_space<vmem>>, vector<8x128xf32>
    %c0_126 = arith.constant 0 : index
    %c0_127 = arith.constant 0 : index
    %252 = vector.load %arg2[%c0_126, %c0_127] : memref<128x128xf32, #tpu.memory_space<vmem>>, vector<128x128xf32>
    %cst_128 = arith.constant dense<0.000000e+00> : vector<8x128xf32>
    %253 = tpu.matmul %250, %252, %cst_128 {dimension_numbers = #tpu.dot_dimension_numbers<[1], [0], [0], [1], [0, 0, 1, 1], [], []>} : vector<8x128xf32>, vector<128x128xf32>, vector<8x128xf32> -> vector<8x128xf32>
    %254 = arith.addf %251, %253 : vector<8x128xf32>
    %cst_129 = arith.constant 5.000000e-01 : f32
    %255 = vector.broadcast %cst_129 : f32 to vector<8x128xf32>
    %256 = arith.mulf %255, %254 : vector<8x128xf32>
    %257 = math.tanh %256 : vector<8x128xf32>
    %cst_130 = arith.constant 1.000000e+00 : f32
    %258 = vector.broadcast %cst_130 : f32 to vector<8x128xf32>
    %259 = arith.addf %257, %258 : vector<8x128xf32>
    %cst_131 = arith.constant 5.000000e-01 : f32
    %260 = vector.broadcast %cst_131 : f32 to vector<8x128xf32>
    %261 = arith.mulf %260, %259 : vector<8x128xf32>
    %262 = math.tanh %254 : vector<8x128xf32>
    %c96_i32_132 = arith.constant 96 : i32
    %263 = tpu.dynamic_rotate %261 by %c96_i32_132 dim 1 : vector<8x128xf32>, i32 -> vector<8x128xf32>
    %c64_i32_133 = arith.constant 64 : i32
    %264 = tpu.dynamic_rotate %262 by %c64_i32_133 dim 1 : vector<8x128xf32>, i32 -> vector<8x128xf32>
    %c32_i32_134 = arith.constant 32 : i32
    %265 = tpu.dynamic_rotate %261 by %c32_i32_134 dim 1 : vector<8x128xf32>, i32 -> vector<8x128xf32>
    %266 = arith.mulf %263, %248 : vector<8x128xf32>
    %267 = arith.mulf %261, %264 : vector<8x128xf32>
    %268 = arith.addf %266, %267 : vector<8x128xf32>
    %269 = math.tanh %268 : vector<8x128xf32>
    %270 = arith.mulf %265, %269 : vector<8x128xf32>
    %c104 = arith.constant 104 : index
    %c0_135 = arith.constant 0 : index
    %271 = vector.load %arg6[%c104, %c0_135] : memref<128x128xf32, #tpu.memory_space<vmem>>, vector<8x128xf32>
    %c0_136 = arith.constant 0 : index
    %c0_137 = arith.constant 0 : index
    %272 = vector.load %arg2[%c0_136, %c0_137] : memref<128x128xf32, #tpu.memory_space<vmem>>, vector<128x128xf32>
    %cst_138 = arith.constant dense<0.000000e+00> : vector<8x128xf32>
    %273 = tpu.matmul %270, %272, %cst_138 {dimension_numbers = #tpu.dot_dimension_numbers<[1], [0], [0], [1], [0, 0, 1, 1], [], []>} : vector<8x128xf32>, vector<128x128xf32>, vector<8x128xf32> -> vector<8x128xf32>
    %274 = arith.addf %271, %273 : vector<8x128xf32>
    %cst_139 = arith.constant 5.000000e-01 : f32
    %275 = vector.broadcast %cst_139 : f32 to vector<8x128xf32>
    %276 = arith.mulf %275, %274 : vector<8x128xf32>
    %277 = math.tanh %276 : vector<8x128xf32>
    %cst_140 = arith.constant 1.000000e+00 : f32
    %278 = vector.broadcast %cst_140 : f32 to vector<8x128xf32>
    %279 = arith.addf %277, %278 : vector<8x128xf32>
    %cst_141 = arith.constant 5.000000e-01 : f32
    %280 = vector.broadcast %cst_141 : f32 to vector<8x128xf32>
    %281 = arith.mulf %280, %279 : vector<8x128xf32>
    %282 = math.tanh %274 : vector<8x128xf32>
    %c96_i32_142 = arith.constant 96 : i32
    %283 = tpu.dynamic_rotate %281 by %c96_i32_142 dim 1 : vector<8x128xf32>, i32 -> vector<8x128xf32>
    %c64_i32_143 = arith.constant 64 : i32
    %284 = tpu.dynamic_rotate %282 by %c64_i32_143 dim 1 : vector<8x128xf32>, i32 -> vector<8x128xf32>
    %c32_i32_144 = arith.constant 32 : i32
    %285 = tpu.dynamic_rotate %281 by %c32_i32_144 dim 1 : vector<8x128xf32>, i32 -> vector<8x128xf32>
    %286 = arith.mulf %283, %268 : vector<8x128xf32>
    %287 = arith.mulf %281, %284 : vector<8x128xf32>
    %288 = arith.addf %286, %287 : vector<8x128xf32>
    %289 = math.tanh %288 : vector<8x128xf32>
    %290 = arith.mulf %285, %289 : vector<8x128xf32>
    %c112 = arith.constant 112 : index
    %c0_145 = arith.constant 0 : index
    %291 = vector.load %arg6[%c112, %c0_145] : memref<128x128xf32, #tpu.memory_space<vmem>>, vector<8x128xf32>
    %c0_146 = arith.constant 0 : index
    %c0_147 = arith.constant 0 : index
    %292 = vector.load %arg2[%c0_146, %c0_147] : memref<128x128xf32, #tpu.memory_space<vmem>>, vector<128x128xf32>
    %cst_148 = arith.constant dense<0.000000e+00> : vector<8x128xf32>
    %293 = tpu.matmul %290, %292, %cst_148 {dimension_numbers = #tpu.dot_dimension_numbers<[1], [0], [0], [1], [0, 0, 1, 1], [], []>} : vector<8x128xf32>, vector<128x128xf32>, vector<8x128xf32> -> vector<8x128xf32>
    %294 = arith.addf %291, %293 : vector<8x128xf32>
    %cst_149 = arith.constant 5.000000e-01 : f32
    %295 = vector.broadcast %cst_149 : f32 to vector<8x128xf32>
    %296 = arith.mulf %295, %294 : vector<8x128xf32>
    %297 = math.tanh %296 : vector<8x128xf32>
    %cst_150 = arith.constant 1.000000e+00 : f32
    %298 = vector.broadcast %cst_150 : f32 to vector<8x128xf32>
    %299 = arith.addf %297, %298 : vector<8x128xf32>
    %cst_151 = arith.constant 5.000000e-01 : f32
    %300 = vector.broadcast %cst_151 : f32 to vector<8x128xf32>
    %301 = arith.mulf %300, %299 : vector<8x128xf32>
    %302 = math.tanh %294 : vector<8x128xf32>
    %c96_i32_152 = arith.constant 96 : i32
    %303 = tpu.dynamic_rotate %301 by %c96_i32_152 dim 1 : vector<8x128xf32>, i32 -> vector<8x128xf32>
    %c64_i32_153 = arith.constant 64 : i32
    %304 = tpu.dynamic_rotate %302 by %c64_i32_153 dim 1 : vector<8x128xf32>, i32 -> vector<8x128xf32>
    %c32_i32_154 = arith.constant 32 : i32
    %305 = tpu.dynamic_rotate %301 by %c32_i32_154 dim 1 : vector<8x128xf32>, i32 -> vector<8x128xf32>
    %306 = arith.mulf %303, %288 : vector<8x128xf32>
    %307 = arith.mulf %301, %304 : vector<8x128xf32>
    %308 = arith.addf %306, %307 : vector<8x128xf32>
    %309 = math.tanh %308 : vector<8x128xf32>
    %310 = arith.mulf %305, %309 : vector<8x128xf32>
    %c120 = arith.constant 120 : index
    %c0_155 = arith.constant 0 : index
    %311 = vector.load %arg6[%c120, %c0_155] : memref<128x128xf32, #tpu.memory_space<vmem>>, vector<8x128xf32>
    %c0_156 = arith.constant 0 : index
    %c0_157 = arith.constant 0 : index
    %312 = vector.load %arg2[%c0_156, %c0_157] : memref<128x128xf32, #tpu.memory_space<vmem>>, vector<128x128xf32>
    %cst_158 = arith.constant dense<0.000000e+00> : vector<8x128xf32>
    %313 = tpu.matmul %310, %312, %cst_158 {dimension_numbers = #tpu.dot_dimension_numbers<[1], [0], [0], [1], [0, 0, 1, 1], [], []>} : vector<8x128xf32>, vector<128x128xf32>, vector<8x128xf32> -> vector<8x128xf32>
    %314 = arith.addf %311, %313 : vector<8x128xf32>
    %cst_159 = arith.constant 5.000000e-01 : f32
    %315 = vector.broadcast %cst_159 : f32 to vector<8x128xf32>
    %316 = arith.mulf %315, %314 : vector<8x128xf32>
    %317 = math.tanh %316 : vector<8x128xf32>
    %cst_160 = arith.constant 1.000000e+00 : f32
    %318 = vector.broadcast %cst_160 : f32 to vector<8x128xf32>
    %319 = arith.addf %317, %318 : vector<8x128xf32>
    %cst_161 = arith.constant 5.000000e-01 : f32
    %320 = vector.broadcast %cst_161 : f32 to vector<8x128xf32>
    %321 = arith.mulf %320, %319 : vector<8x128xf32>
    %322 = math.tanh %314 : vector<8x128xf32>
    %c96_i32_162 = arith.constant 96 : i32
    %323 = tpu.dynamic_rotate %321 by %c96_i32_162 dim 1 : vector<8x128xf32>, i32 -> vector<8x128xf32>
    %c64_i32_163 = arith.constant 64 : i32
    %324 = tpu.dynamic_rotate %322 by %c64_i32_163 dim 1 : vector<8x128xf32>, i32 -> vector<8x128xf32>
    %c32_i32_164 = arith.constant 32 : i32
    %325 = tpu.dynamic_rotate %321 by %c32_i32_164 dim 1 : vector<8x128xf32>, i32 -> vector<8x128xf32>
    %326 = arith.mulf %323, %308 : vector<8x128xf32>
    %327 = arith.mulf %321, %324 : vector<8x128xf32>
    %328 = arith.addf %326, %327 : vector<8x128xf32>
    %329 = math.tanh %328 : vector<8x128xf32>
    %330 = arith.mulf %325, %329 : vector<8x128xf32>
    %c0_165 = arith.constant 0 : index
    %c0_166 = arith.constant 0 : index
    %331 = vector.load %arg3[%c0_165, %c0_166] : memref<128x128xf32, #tpu.memory_space<vmem>>, vector<128x128xf32>
    %cst_167 = arith.constant dense<0.000000e+00> : vector<8x128xf32>
    %332 = tpu.matmul %330, %331, %cst_167 {dimension_numbers = #tpu.dot_dimension_numbers<[1], [0], [0], [1], [0, 0, 1, 1], [], []>} : vector<8x128xf32>, vector<128x128xf32>, vector<8x128xf32> -> vector<8x128xf32>
    %c0_168 = arith.constant 0 : index
    %c0_169 = arith.constant 0 : index
    %333 = vector.load %arg4[%c0_168, %c0_169] : memref<1x128xf32, #tpu.memory_space<vmem>>, vector<1x128xf32>
    %334 = vector.broadcast %333 : vector<1x128xf32> to vector<8x128xf32>
    %335 = arith.addf %332, %334 : vector<8x128xf32>
    %c0_170 = arith.constant 0 : index
    %c0_171 = arith.constant 0 : index
    %336 = vector.load %arg5[%c0_170, %c0_171] : memref<8x128xf32, #tpu.memory_space<vmem>>, vector<8x128xf32>
    tpu.vector_store %arg5[%c0_170, %c0_171], %335 {strides = array<i32>} : memref<8x128xf32, #tpu.memory_space<vmem>>, vector<8x128xf32>,
    return
  }
}

</mosaic_0001>

<llo_original>
// kernel: tpu_custom_call.1
$region0: #{tpu_custom_call.1}
  #allocation0 [shape = 'u32[]', space=smem, size = 0x4, offset = 0x4, fixed_abs, tag = 'smem constant byte address 0x4 - core index']
  #allocation1 [shape = 'u32[144,128]{1,0:T(1,128)}', space=vmem, size = 0x12000, scoped, tag = 'internal scratch']
  #allocation2 [shape = 'f32[128,128]{1,0:T(8,128)}', space=vmem, size = 0x10000, scoped, tag = 'scratch operand']
  %s0 = inlined_call_operand.vmem [shape: s32[128,1], index: 0, kind: input, shape index: {}]
  %s1 = inlined_call_operand.vmem [shape: f32[128,128], index: 1, kind: input, shape index: {}]
  %s2 = inlined_call_operand.hbm [shape: f32[128,128], index: 2, kind: input, shape index: {}]
  %s3 = inlined_call_operand.hbm [shape: f32[128,128], index: 3, kind: input, shape index: {}]
  %s4 = inlined_call_operand.vmem [shape: f32[1,128], index: 4, kind: input, shape index: {}]
  %s5 = inlined_call_operand.hbm [shape: f32[8,128], index: 5, kind: output, shape index: {}]
  %s6 = sld [smem:[#allocation0]]
  $region38: #{tpu_custom_call.1} parent=0
    _
  %s8 = ssub.s32 1, %s6
  %s9 = scalar_select 0, %s8, %s6
  $region1: #{tpu_custom_call.1} parent=0
    #allocation3 [shape = 'u8[65536]{0}', space=vmem, size = 0x10000, scoped, tag = 'input window, operand 2, single buffered']
    #allocation4 [shape = 's32[1]{0}', space=sflag, size = 0x4, scoped, tag = 'scoped memory for tpu_custom_call.1']
    #allocation5 [shape = 's32[1]{0}', space=sflag, size = 0x4, scoped, tag = 'scoped memory for tpu_custom_call.1']
    #allocation6 [shape = 'u8[65536]{0}', space=vmem, size = 0x10000, scoped, tag = 'input window, operand 3, single buffered']
    #allocation7 [shape = 's32[1]{0}', space=sflag, size = 0x4, scoped, tag = 'scoped memory for tpu_custom_call.1']
    #allocation8 [shape = 'u8[4096]{0}', space=vmem, size = 0x1000, scoped, tag = 'output window, operand 0, single buffered']
    %10 = vsyncpa [#allocation4], 0
    %11 = vsyncpa [#allocation7], 0
    %12 = vsyncpa [#allocation5], 0
    // Predicated region
    $region2: #{tpu_custom_call.1} parent=1 // pred_check
      _
    $region3: #{tpu_custom_call.1} parent=1 // pred_check_branch
      %14 = sbr.rel (0) target = $region5
    $region4: #{tpu_custom_call.1} parent=1 // pred_region
      _
    $region5: #{tpu_custom_call.1} parent=1 // pred_fallthru
      _
    // Predicated region
    $region6: #{tpu_custom_call.1} parent=1 // pred_check
      _
    $region7: #{tpu_custom_call.1} parent=1 // pred_check_branch
      %16 = sbr.rel (0) target = $region9
    $region8: #{tpu_custom_call.1} parent=1 // pred_region
      _
    $region9: #{tpu_custom_call.1} parent=1 // pred_fallthru
      _
    // Predicated region
    $region10: #{tpu_custom_call.1} parent=1 // pred_check
      _
    $region11: #{tpu_custom_call.1} parent=1 // pred_check_branch
      %18 = sbr.rel (0) target = $region13
    $region12: #{tpu_custom_call.1} parent=1 // pred_region
      %s20 = ssub.s32 2048, 2048
      %21 = vsyncadd [#allocation4], %s20
      %s22 = sshll.u32 [#allocation3], 4
      %s23 = int_to_ptr.vmem [resolvable:$true] %s22
      %28 = dma.hbm_to_vmem [thread:$0]  %s2, 2048, %s23, [#allocation4], 128, 128, 8
    $region13: #{tpu_custom_call.1} parent=1 // pred_fallthru
      _
    // Predicated region
    $region14: #{tpu_custom_call.1} parent=1 // pred_check
      _
    $region15: #{tpu_custom_call.1} parent=1 // pred_check_branch
      %30 = sbr.rel (0) target = $region17
    $region16: #{tpu_custom_call.1} parent=1 // pred_region
      %s32 = ssub.s32 2048, 2048
      %33 = vsyncadd [#allocation7], %s32
      %s34 = sshll.u32 [#allocation6], 4
      %s35 = int_to_ptr.vmem [resolvable:$true] %s34
      %40 = dma.hbm_to_vmem [thread:$0]  %s3, 2048, %s35, [#allocation7], 128, 128, 8
    $region17: #{tpu_custom_call.1} parent=1 // pred_fallthru
      _
    // Predicated region
    $region18: #{tpu_custom_call.1} parent=1 // pred_check
      _
    $region19: #{tpu_custom_call.1} parent=1 // pred_check_branch
      %42 = sbr.rel (0) target = $region21
    $region20: #{tpu_custom_call.1} parent=1 // pred_region
      _
    $region21: #{tpu_custom_call.1} parent=1 // pred_fallthru
      _
    // Predicated region
    $region22: #{tpu_custom_call.1} parent=1 // pred_check
      _
    $region23: #{tpu_custom_call.1} parent=1 // pred_check_branch
      %44 = sbr.rel (0) target = $region25
    $region24: #{tpu_custom_call.1} parent=1 // pred_region
      %45 = dma.done [#allocation4], 2048
    $region25: #{tpu_custom_call.1} parent=1 // pred_fallthru
      _
    // Predicated region
    $region26: #{tpu_custom_call.1} parent=1 // pred_check
      _
    $region27: #{tpu_custom_call.1} parent=1 // pred_check_branch
      %47 = sbr.rel (0) target = $region29
    $region28: #{tpu_custom_call.1} parent=1 // pred_region
      %48 = dma.done [#allocation7], 2048
    $region29: #{tpu_custom_call.1} parent=1 // pred_fallthru
      _
    %v49 = vld [vmem:[%s0] sm:$0xff]
    %v50 = vld [vmem:[%s0 + $0x8] sm:$0xff]
    %v51 = vld [vmem:[%s0 + $0x10] sm:$0xff]
    %v52 = vld [vmem:[%s0 + $0x18] sm:$0xff]
    %v53 = vld [vmem:[%s0 + $0x20] sm:$0xff]
    %v54 = vld [vmem:[%s0 + $0x28] sm:$0xff]
    %v55 = vld [vmem:[%s0 + $0x30] sm:$0xff]
    %v56 = vld [vmem:[%s0 + $0x38] sm:$0xff]
    %v57 = vld [vmem:[%s0 + $0x40] sm:$0xff]
    %v58 = vld [vmem:[%s0 + $0x48] sm:$0xff]
    %v59 = vld [vmem:[%s0 + $0x50] sm:$0xff]
    %v60 = vld [vmem:[%s0 + $0x58] sm:$0xff]
    %v61 = vld [vmem:[%s0 + $0x60] sm:$0xff]
    %v62 = vld [vmem:[%s0 + $0x68] sm:$0xff]
    %v63 = vld [vmem:[%s0 + $0x70] sm:$0xff]
    %v64 = vld [vmem:[%s0 + $0x78] sm:$0xff]
    %v65 = vlaneseq
    %v66 = vand.u32 %v65, 127
    %67 = vset.pattern.permute.xlu0 0
    %68 = vperm.xlu0 %67, %v49
    %v69 = vpop.permute.xlu0 %68
    %70 = vset.pattern.permute.xlu0 0
    %71 = vperm.xlu0 %70, %v50
    %v72 = vpop.permute.xlu0 %71
    %73 = vset.pattern.permute.xlu0 0
    %74 = vperm.xlu0 %73, %v51
    %v75 = vpop.permute.xlu0 %74
    %76 = vset.pattern.permute.xlu0 0
    %77 = vperm.xlu0 %76, %v52
    %v78 = vpop.permute.xlu0 %77
    %79 = vset.pattern.permute.xlu0 0
    %80 = vperm.xlu0 %79, %v53
    %v81 = vpop.permute.xlu0 %80
    %82 = vset.pattern.permute.xlu0 0
    %83 = vperm.xlu0 %82, %v54
    %v84 = vpop.permute.xlu0 %83
    %85 = vset.pattern.permute.xlu0 0
    %86 = vperm.xlu0 %85, %v55
    %v87 = vpop.permute.xlu0 %86
    %88 = vset.pattern.permute.xlu0 0
    %89 = vperm.xlu0 %88, %v56
    %v90 = vpop.permute.xlu0 %89
    %91 = vset.pattern.permute.xlu0 0
    %92 = vperm.xlu0 %91, %v57
    %v93 = vpop.permute.xlu0 %92
    %94 = vset.pattern.permute.xlu0 0
    %95 = vperm.xlu0 %94, %v58
    %v96 = vpop.permute.xlu0 %95
    %97 = vset.pattern.permute.xlu0 0
    %98 = vperm.xlu0 %97, %v59
    %v99 = vpop.permute.xlu0 %98
    %100 = vset.pattern.permute.xlu0 0
    %101 = vperm.xlu0 %100, %v60
    %v102 = vpop.permute.xlu0 %101
    %103 = vset.pattern.permute.xlu0 0
    %104 = vperm.xlu0 %103, %v61
    %v105 = vpop.permute.xlu0 %104
    %106 = vset.pattern.permute.xlu0 0
    %107 = vperm.xlu0 %106, %v62
    %v108 = vpop.permute.xlu0 %107
    %109 = vset.pattern.permute.xlu0 0
    %110 = vperm.xlu0 %109, %v63
    %v111 = vpop.permute.xlu0 %110
    %112 = vset.pattern.permute.xlu0 0
    %113 = vperm.xlu0 %112, %v64
    %v114 = vpop.permute.xlu0 %113
    %vm115 = vcmp.eq.s32.totalorder %v66, %v69
    %vm116 = vcmp.eq.s32.totalorder %v66, %v72
    %vm117 = vcmp.eq.s32.totalorder %v66, %v75
    %vm118 = vcmp.eq.s32.totalorder %v66, %v78
    %vm119 = vcmp.eq.s32.totalorder %v66, %v81
    %vm120 = vcmp.eq.s32.totalorder %v66, %v84
    %vm121 = vcmp.eq.s32.totalorder %v66, %v87
    %vm122 = vcmp.eq.s32.totalorder %v66, %v90
    %vm123 = vcmp.eq.s32.totalorder %v66, %v93
    %vm124 = vcmp.eq.s32.totalorder %v66, %v96
    %vm125 = vcmp.eq.s32.totalorder %v66, %v99
    %vm126 = vcmp.eq.s32.totalorder %v66, %v102
    %vm127 = vcmp.eq.s32.totalorder %v66, %v105
    %vm128 = vcmp.eq.s32.totalorder %v66, %v108
    %vm129 = vcmp.eq.s32.totalorder %v66, %v111
    %vm130 = vcmp.eq.s32.totalorder %v66, %v114
    %v131 = vsel %vm115, 1, 0
    %v132 = vsel %vm116, 1, 0
    %v133 = vsel %vm117, 1, 0
    %v134 = vsel %vm118, 1, 0
    %v135 = vsel %vm119, 1, 0
    %v136 = vsel %vm120, 1, 0
    %v137 = vsel %vm121, 1, 0
    %v138 = vsel %vm122, 1, 0
    %v139 = vsel %vm123, 1, 0
    %v140 = vsel %vm124, 1, 0
    %v141 = vsel %vm125, 1, 0
    %v142 = vsel %vm126, 1, 0
    %v143 = vsel %vm127, 1, 0
    %v144 = vsel %vm128, 1, 0
    %v145 = vsel %vm129, 1, 0
    %v146 = vsel %vm130, 1, 0
    %v147 = vcvt.s32.f32 %v131
    %v148 = vcvt.s32.f32 %v132
    %v149 = vcvt.s32.f32 %v133
    %v150 = vcvt.s32.f32 %v134
    %v151 = vcvt.s32.f32 %v135
    %v152 = vcvt.s32.f32 %v136
    %v153 = vcvt.s32.f32 %v137
    %v154 = vcvt.s32.f32 %v138
    %v155 = vcvt.s32.f32 %v139
    %v156 = vcvt.s32.f32 %v140
    %v157 = vcvt.s32.f32 %v141
    %v158 = vcvt.s32.f32 %v142
    %v159 = vcvt.s32.f32 %v143
    %v160 = vcvt.s32.f32 %v144
    %v161 = vcvt.s32.f32 %v145
    %v162 = vcvt.s32.f32 %v146
    %v163 = vld [vmem:[%s1] sm:$0xff]
    %v164 = vld [vmem:[%s1 + $0x8] sm:$0xff]
    %v165 = vld [vmem:[%s1 + $0x10] sm:$0xff]
    %v166 = vld [vmem:[%s1 + $0x18] sm:$0xff]
    %v167 = vld [vmem:[%s1 + $0x20] sm:$0xff]
    %v168 = vld [vmem:[%s1 + $0x28] sm:$0xff]
    %v169 = vld [vmem:[%s1 + $0x30] sm:$0xff]
    %v170 = vld [vmem:[%s1 + $0x38] sm:$0xff]
    %v171 = vld [vmem:[%s1 + $0x40] sm:$0xff]
    %v172 = vld [vmem:[%s1 + $0x48] sm:$0xff]
    %v173 = vld [vmem:[%s1 + $0x50] sm:$0xff]
    %v174 = vld [vmem:[%s1 + $0x58] sm:$0xff]
    %v175 = vld [vmem:[%s1 + $0x60] sm:$0xff]
    %v176 = vld [vmem:[%s1 + $0x68] sm:$0xff]
    %v177 = vld [vmem:[%s1 + $0x70] sm:$0xff]
    %v178 = vld [vmem:[%s1 + $0x78] sm:$0xff]
    %179 = vmatprep.subr.mxu0 0.0
    %180 = vmatpush1.msra.mxu0 %v163
    %181 = vmatprep.subr.mxu0 0.0
    %182 = vmatpush1.msra.mxu0 %v164
    %183 = vmatprep.subr.mxu0 0.0
    %184 = vmatpush1.msra.mxu0 %v165
    %185 = vmatprep.subr.mxu0 0.0
    %186 = vmatpush1.msra.mxu0 %v166
    %187 = vmatprep.subr.mxu0 0.0
    %188 = vmatpush1.msra.mxu0 %v167
    %189 = vmatprep.subr.mxu0 0.0
    %190 = vmatpush1.msra.mxu0 %v168
    %191 = vmatprep.subr.mxu0 0.0
    %192 = vmatpush1.msra.mxu0 %v169
    %193 = vmatprep.subr.mxu0 0.0
    %194 = vmatpush1.msra.mxu0 %v170
    %195 = vmatprep.subr.mxu0 0.0
    %196 = vmatpush1.msra.mxu0 %v171
    %197 = vmatprep.subr.mxu0 0.0
    %198 = vmatpush1.msra.mxu0 %v172
    %199 = vmatprep.subr.mxu0 0.0
    %200 = vmatpush1.msra.mxu0 %v173
    %201 = vmatprep.subr.mxu0 0.0
    %202 = vmatpush1.msra.mxu0 %v174
    %203 = vmatprep.subr.mxu0 0.0
    %204 = vmatpush1.msra.mxu0 %v175
    %205 = vmatprep.subr.mxu0 0.0
    %206 = vmatpush1.msra.mxu0 %v176
    %207 = vmatprep.subr.mxu0 0.0
    %208 = vmatpush1.msra.mxu0 %v177
    %209 = vmatprep.subr.mxu0 0.0
    %210 = vmatpush1.msra.mxu0 %v178
    %211 = vmatprep.subr.mxu0 0.0
    %212 = vmatpush1.msra.mxu0 0.0
    %213 = vmatprep.subr.mxu0 0.0
    %214 = vmatpush1.msra.mxu0 0.0
    %215 = vmatprep.subr.mxu0 0.0
    %216 = vmatpush1.msra.mxu0 0.0
    %217 = vmatprep.subr.mxu0 0.0
    %218 = vmatpush1.msra.mxu0 0.0
    %219 = vmatprep.subr.mxu0 0.0
    %220 = vmatpush1.msra.mxu0 0.0
    %221 = vmatprep.subr.mxu0 0.0
    %222 = vmatpush1.msra.mxu0 0.0
    %223 = vmatprep.subr.mxu0 0.0
    %224 = vmatpush1.msra.mxu0 0.0
    %225 = vmatprep.subr.mxu0 0.0
    %226 = vmatpush1.msra.mxu0 0.0
    %227 = vmatprep.subr.mxu0 0.0
    %228 = vmatpush1.msra.mxu0 0.0
    %229 = vmatprep.subr.mxu0 0.0
    %230 = vmatpush1.msra.mxu0 0.0
    %231 = vmatprep.subr.mxu0 0.0
    %232 = vmatpush1.msra.mxu0 0.0
    %233 = vmatprep.subr.mxu0 0.0
    %234 = vmatpush1.msra.mxu0 0.0
    %235 = vmatprep.subr.mxu0 0.0
    %236 = vmatpush1.msra.mxu0 0.0
    %237 = vmatprep.subr.mxu0 0.0
    %238 = vmatpush1.msra.mxu0 0.0
    %239 = vmatprep.subr.mxu0 0.0
    %240 = vmatpush1.msra.mxu0 0.0
    %241 = vmatprep.subr.mxu0 0.0
    %242 = vmatpush1.msra.mxu0 0.0
    %243 = vmatprep.mubr.f32.mxu0 0.0
    %244 = vmatmul.mubr.f32.gmra.mrb[0].mxu0 %v147
    %v245 = vpop.f32.mrb[0].mxu0
    %v246 = vadd.f32 0.0, %v245
    %v247 = vpop.f32.mrb[0].mxu0
    %248 = vmatprep.mubr.f32.mxu0 0.0
    %249 = vmatmul.mubr.f32.gmra.mrb[0].mxu0 %v148
    %v250 = vpop.f32.mrb[0].mxu0
    %v251 = vadd.f32 0.0, %v250
    %v252 = vpop.f32.mrb[0].mxu0
    %253 = vmatprep.mubr.f32.mxu0 0.0
    %254 = vmatmul.mubr.f32.gmra.mrb[0].mxu0 %v149
    %v255 = vpop.f32.mrb[0].mxu0
    %v256 = vadd.f32 0.0, %v255
    %v257 = vpop.f32.mrb[0].mxu0
    %258 = vmatprep.mubr.f32.mxu0 0.0
    %259 = vmatmul.mubr.f32.gmra.mrb[0].mxu0 %v150
    %v260 = vpop.f32.mrb[0].mxu0
    %v261 = vadd.f32 0.0, %v260
    %v262 = vpop.f32.mrb[0].mxu0
    %263 = vmatprep.mubr.f32.mxu0 0.0
    %264 = vmatmul.mubr.f32.gmra.mrb[0].mxu0 %v151
    %v265 = vpop.f32.mrb[0].mxu0
    %v266 = vadd.f32 0.0, %v265
    %v267 = vpop.f32.mrb[0].mxu0
    %268 = vmatprep.mubr.f32.mxu0 0.0
    %269 = vmatmul.mubr.f32.gmra.mrb[0].mxu0 %v152
    %v270 = vpop.f32.mrb[0].mxu0
    %v271 = vadd.f32 0.0, %v270
    %v272 = vpop.f32.mrb[0].mxu0
    %273 = vmatprep.mubr.f32.mxu0 0.0
    %274 = vmatmul.mubr.f32.gmra.mrb[0].mxu0 %v153
    %v275 = vpop.f32.mrb[0].mxu0
    %v276 = vadd.f32 0.0, %v275
    %v277 = vpop.f32.mrb[0].mxu0
    %278 = vmatprep.mubr.f32.mxu0 0.0
    %279 = vmatmul.mubr.f32.gmra.mrb[0].mxu0 %v154
    %v280 = vpop.f32.mrb[0].mxu0
    %v281 = vadd.f32 0.0, %v280
    %v282 = vpop.f32.mrb[0].mxu0
    %283 = vmatprep.mubr.f32.mxu0 0.0
    %284 = vmatmul.mubr.f32.gmra.mrb[0].mxu0 %v155
    %v285 = vpop.f32.mrb[0].mxu0
    %v286 = vadd.f32 0.0, %v285
    %v287 = vpop.f32.mrb[0].mxu0
    %288 = vmatprep.mubr.f32.mxu0 0.0
    %289 = vmatmul.mubr.f32.gmra.mrb[0].mxu0 %v156
    %v290 = vpop.f32.mrb[0].mxu0
    %v291 = vadd.f32 0.0, %v290
    %v292 = vpop.f32.mrb[0].mxu0
    %293 = vmatprep.mubr.f32.mxu0 0.0
    %294 = vmatmul.mubr.f32.gmra.mrb[0].mxu0 %v157
    %v295 = vpop.f32.mrb[0].mxu0
    %v296 = vadd.f32 0.0, %v295
    %v297 = vpop.f32.mrb[0].mxu0
    %298 = vmatprep.mubr.f32.mxu0 0.0
    %299 = vmatmul.mubr.f32.gmra.mrb[0].mxu0 %v158
    %v300 = vpop.f32.mrb[0].mxu0
    %v301 = vadd.f32 0.0, %v300
    %v302 = vpop.f32.mrb[0].mxu0
    %303 = vmatprep.mubr.f32.mxu0 0.0
    %304 = vmatmul.mubr.f32.gmra.mrb[0].mxu0 %v159
    %v305 = vpop.f32.mrb[0].mxu0
    %v306 = vadd.f32 0.0, %v305
    %v307 = vpop.f32.mrb[0].mxu0
    %308 = vmatprep.mubr.f32.mxu0 0.0
    %309 = vmatmul.mubr.f32.gmra.mrb[0].mxu0 %v160
    %v310 = vpop.f32.mrb[0].mxu0
    %v311 = vadd.f32 0.0, %v310
    %v312 = vpop.f32.mrb[0].mxu0
    %313 = vmatprep.mubr.f32.mxu0 0.0
    %314 = vmatmul.mubr.f32.gmra.mrb[0].mxu0 %v161
    %v315 = vpop.f32.mrb[0].mxu0
    %v316 = vadd.f32 0.0, %v315
    %v317 = vpop.f32.mrb[0].mxu0
    %318 = vmatprep.mubr.f32.mxu0 0.0
    %319 = vmatmul.mubr.f32.gmra.mrb[0].mxu0 %v162
    %v320 = vpop.f32.mrb[0].mxu0
    %v321 = vadd.f32 0.0, %v320
    %v322 = vpop.f32.mrb[0].mxu0
    %323 = vdwg.mxu0
    %324 = vst [vmem:[#allocation2] sm:$0xff] %v246
    %325 = vst [vmem:[#allocation2 + $0x8] sm:$0xff] %v251
    %326 = vst [vmem:[#allocation2 + $0x10] sm:$0xff] %v256
    %327 = vst [vmem:[#allocation2 + $0x18] sm:$0xff] %v261
    %328 = vst [vmem:[#allocation2 + $0x20] sm:$0xff] %v266
    %329 = vst [vmem:[#allocation2 + $0x28] sm:$0xff] %v271
    %330 = vst [vmem:[#allocation2 + $0x30] sm:$0xff] %v276
    %331 = vst [vmem:[#allocation2 + $0x38] sm:$0xff] %v281
    %332 = vst [vmem:[#allocation2 + $0x40] sm:$0xff] %v286
    %333 = vst [vmem:[#allocation2 + $0x48] sm:$0xff] %v291
    %334 = vst [vmem:[#allocation2 + $0x50] sm:$0xff] %v296
    %335 = vst [vmem:[#allocation2 + $0x58] sm:$0xff] %v301
    %336 = vst [vmem:[#allocation2 + $0x60] sm:$0xff] %v306
    %337 = vst [vmem:[#allocation2 + $0x68] sm:$0xff] %v311
    %338 = vst [vmem:[#allocation2 + $0x70] sm:$0xff] %v316
    %339 = vst [vmem:[#allocation2 + $0x78] sm:$0xff] %v321
    %v340 = vld [vmem:[#allocation2] sm:$0xff]
    %v341 = vld [vmem:[#allocation3] sm:$0xff]
    %v342 = vld [vmem:[#allocation3 + $0x8] sm:$0xff]
    %v343 = vld [vmem:[#allocation3 + $0x10] sm:$0xff]
    %v344 = vld [vmem:[#allocation3 + $0x18] sm:$0xff]
    %v345 = vld [vmem:[#allocation3 + $0x20] sm:$0xff]
    %v346 = vld [vmem:[#allocation3 + $0x28] sm:$0xff]
    %v347 = vld [vmem:[#allocation3 + $0x30] sm:$0xff]
    %v348 = vld [vmem:[#allocation3 + $0x38] sm:$0xff]
    %v349 = vld [vmem:[#allocation3 + $0x40] sm:$0xff]
    %v350 = vld [vmem:[#allocation3 + $0x48] sm:$0xff]
    %v351 = vld [vmem:[#allocation3 + $0x50] sm:$0xff]
    %v352 = vld [vmem:[#allocation3 + $0x58] sm:$0xff]
    %v353 = vld [vmem:[#allocation3 + $0x60] sm:$0xff]
    %v354 = vld [vmem:[#allocation3 + $0x68] sm:$0xff]
    %v355 = vld [vmem:[#allocation3 + $0x70] sm:$0xff]
    %v356 = vld [vmem:[#allocation3 + $0x78] sm:$0xff]
    %357 = vmatprep.subr.mxu0 0.0
    %358 = vmatpush1.msra.mxu0 %v341
    %359 = vmatprep.subr.mxu0 0.0
    %360 = vmatpush1.msra.mxu0 %v342
    %361 = vmatprep.subr.mxu0 0.0
    %362 = vmatpush1.msra.mxu0 %v343
    %363 = vmatprep.subr.mxu0 0.0
    %364 = vmatpush1.msra.mxu0 %v344
    %365 = vmatprep.subr.mxu0 0.0
    %366 = vmatpush1.msra.mxu0 %v345
    %367 = vmatprep.subr.mxu0 0.0
    %368 = vmatpush1.msra.mxu0 %v346
    %369 = vmatprep.subr.mxu0 0.0
    %370 = vmatpush1.msra.mxu0 %v347
    %371 = vmatprep.subr.mxu0 0.0
    %372 = vmatpush1.msra.mxu0 %v348
    %373 = vmatprep.subr.mxu0 0.0
    %374 = vmatpush1.msra.mxu0 %v349
    %375 = vmatprep.subr.mxu0 0.0
    %376 = vmatpush1.msra.mxu0 %v350
    %377 = vmatprep.subr.mxu0 0.0
    %378 = vmatpush1.msra.mxu0 %v351
    %379 = vmatprep.subr.mxu0 0.0
    %380 = vmatpush1.msra.mxu0 %v352
    %381 = vmatprep.subr.mxu0 0.0
    %382 = vmatpush1.msra.mxu0 %v353
    %383 = vmatprep.subr.mxu0 0.0
    %384 = vmatpush1.msra.mxu0 %v354
    %385 = vmatprep.subr.mxu0 0.0
    %386 = vmatpush1.msra.mxu0 %v355
    %387 = vmatprep.subr.mxu0 0.0
    %388 = vmatpush1.msra.mxu0 %v356
    %389 = vmatprep.subr.mxu0 0.0
    %390 = vmatpush1.msra.mxu0 0.0
    %391 = vmatprep.subr.mxu0 0.0
    %392 = vmatpush1.msra.mxu0 0.0
    %393 = vmatprep.subr.mxu0 0.0
    %394 = vmatpush1.msra.mxu0 0.0
    %395 = vmatprep.subr.mxu0 0.0
    %396 = vmatpush1.msra.mxu0 0.0
    %397 = vmatprep.subr.mxu0 0.0
    %398 = vmatpush1.msra.mxu0 0.0
    %399 = vmatprep.subr.mxu0 0.0
    %400 = vmatpush1.msra.mxu0 0.0
    %401 = vmatprep.subr.mxu0 0.0
    %402 = vmatpush1.msra.mxu0 0.0
    %403 = vmatprep.subr.mxu0 0.0
    %404 = vmatpush1.msra.mxu0 0.0
    %405 = vmatprep.subr.mxu0 0.0
    %406 = vmatpush1.msra.mxu0 0.0
    %407 = vmatprep.subr.mxu0 0.0
    %408 = vmatpush1.msra.mxu0 0.0
    %409 = vmatprep.subr.mxu0 0.0
    %410 = vmatpush1.msra.mxu0 0.0
    %411 = vmatprep.subr.mxu0 0.0
    %412 = vmatpush1.msra.mxu0 0.0
    %413 = vmatprep.subr.mxu0 0.0
    %414 = vmatpush1.msra.mxu0 0.0
    %415 = vmatprep.subr.mxu0 0.0
    %416 = vmatpush1.msra.mxu0 0.0
    %417 = vmatprep.subr.mxu0 0.0
    %418 = vmatpush1.msra.mxu0 0.0
    %419 = vmatprep.subr.mxu0 0.0
    %420 = vmatpush1.msra.mxu0 0.0
    %421 = vmatprep.mubr.f32.mxu0 0.0
    %422 = vmatmul.mubr.f32.gmra.mrb[0].mxu0 0.0
    %v423 = vpop.f32.mrb[0].mxu0
    %v424 = vadd.f32 0.0, %v423
    %v425 = vpop.f32.mrb[0].mxu0
    %426 = vdwg.mxu0
    %v427 = vadd.f32 %v340, %v424
    %v428 = vmul.f32 %v427, 0.5
    %v429 = vtanh.pop %v428
    %v430 = vadd.f32 %v429, 1.0
    %v431 = vmul.f32 %v430, 0.5
    %v432 = vtanh.pop %v427
    %433 = vrot.lane.b32.xlu0 %v431, 96
    %v434 = vpop.permute.xlu0 %433
    %435 = vrot.lane.b32.xlu0 %v432, 64
    %v436 = vpop.permute.xlu0 %435
    %437 = vrot.lane.b32.xlu0 %v431, 32
    %v438 = vpop.permute.xlu0 %437
    %v439 = vmul.f32 %v434, 0.0
    %v440 = vmul.f32 %v431, %v436
    %v441 = vadd.f32 %v439, %v440
    %v442 = vtanh.pop %v441
    %v443 = vmul.f32 %v438, %v442
    %v444 = vld [vmem:[#allocation2 + $0x8] sm:$0xff]
    %445 = vmatprep.subr.mxu0 0.0
    %446 = vmatpush1.msra.mxu0 %v341
    %447 = vmatprep.subr.mxu0 0.0
    %448 = vmatpush1.msra.mxu0 %v342
    %449 = vmatprep.subr.mxu0 0.0
    %450 = vmatpush1.msra.mxu0 %v343
    %451 = vmatprep.subr.mxu0 0.0
    %452 = vmatpush1.msra.mxu0 %v344
    %453 = vmatprep.subr.mxu0 0.0
    %454 = vmatpush1.msra.mxu0 %v345
    %455 = vmatprep.subr.mxu0 0.0
    %456 = vmatpush1.msra.mxu0 %v346
    %457 = vmatprep.subr.mxu0 0.0
    %458 = vmatpush1.msra.mxu0 %v347
    %459 = vmatprep.subr.mxu0 0.0
    %460 = vmatpush1.msra.mxu0 %v348
    %461 = vmatprep.subr.mxu0 0.0
    %462 = vmatpush1.msra.mxu0 %v349
    %463 = vmatprep.subr.mxu0 0.0
    %464 = vmatpush1.msra.mxu0 %v350
    %465 = vmatprep.subr.mxu0 0.0
    %466 = vmatpush1.msra.mxu0 %v351
    %467 = vmatprep.subr.mxu0 0.0
    %468 = vmatpush1.msra.mxu0 %v352
    %469 = vmatprep.subr.mxu0 0.0
    %470 = vmatpush1.msra.mxu0 %v353
    %471 = vmatprep.subr.mxu0 0.0
    %472 = vmatpush1.msra.mxu0 %v354
    %473 = vmatprep.subr.mxu0 0.0
    %474 = vmatpush1.msra.mxu0 %v355
    %475 = vmatprep.subr.mxu0 0.0
    %476 = vmatpush1.msra.mxu0 %v356
    %477 = vmatprep.subr.mxu0 0.0
    %478 = vmatpush1.msra.mxu0 0.0
    %479 = vmatprep.subr.mxu0 0.0
    %480 = vmatpush1.msra.mxu0 0.0
    %481 = vmatprep.subr.mxu0 0.0
    %482 = vmatpush1.msra.mxu0 0.0
    %483 = vmatprep.subr.mxu0 0.0
    %484 = vmatpush1.msra.mxu0 0.0
    %485 = vmatprep.subr.mxu0 0.0
    %486 = vmatpush1.msra.mxu0 0.0
    %487 = vmatprep.subr.mxu0 0.0
    %488 = vmatpush1.msra.mxu0 0.0
    %489 = vmatprep.subr.mxu0 0.0
    %490 = vmatpush1.msra.mxu0 0.0
    %491 = vmatprep.subr.mxu0 0.0
    %492 = vmatpush1.msra.mxu0 0.0
    %493 = vmatprep.subr.mxu0 0.0
    %494 = vmatpush1.msra.mxu0 0.0
    %495 = vmatprep.subr.mxu0 0.0
    %496 = vmatpush1.msra.mxu0 0.0
    %497 = vmatprep.subr.mxu0 0.0
    %498 = vmatpush1.msra.mxu0 0.0
    %499 = vmatprep.subr.mxu0 0.0
    %500 = vmatpush1.msra.mxu0 0.0
    %501 = vmatprep.subr.mxu0 0.0
    %502 = vmatpush1.msra.mxu0 0.0
    %503 = vmatprep.subr.mxu0 0.0
    %504 = vmatpush1.msra.mxu0 0.0
    %505 = vmatprep.subr.mxu0 0.0
    %506 = vmatpush1.msra.mxu0 0.0
    %507 = vmatprep.subr.mxu0 0.0
    %508 = vmatpush1.msra.mxu0 0.0
    %509 = vmatprep.mubr.f32.mxu0 0.0
    %510 = vmatmul.mubr.f32.gmra.mrb[0].mxu0 %v443
    %v511 = vpop.f32.mrb[0].mxu0
    %v512 = vadd.f32 0.0, %v511
    %v513 = vpop.f32.mrb[0].mxu0
    %514 = vdwg.mxu0
    %v515 = vadd.f32 %v444, %v512
    %v516 = vmul.f32 %v515, 0.5
    %v517 = vtanh.pop %v516
    %v518 = vadd.f32 %v517, 1.0
    %v519 = vmul.f32 %v518, 0.5
    %v520 = vtanh.pop %v515
    %521 = vrot.lane.b32.xlu0 %v519, 96
    %v522 = vpop.permute.xlu0 %521
    %523 = vrot.lane.b32.xlu0 %v520, 64
    %v524 = vpop.permute.xlu0 %523
    %525 = vrot.lane.b32.xlu0 %v519, 32
    %v526 = vpop.permute.xlu0 %525
    %v527 = vmul.f32 %v522, %v441
    %v528 = vmul.f32 %v519, %v524
    %v529 = vadd.f32 %v527, %v528
    %v530 = vtanh.pop %v529
    %v531 = vmul.f32 %v526, %v530
    %v532 = vld [vmem:[#allocation2 + $0x10] sm:$0xff]
    %533 = vmatprep.subr.mxu0 0.0
    %534 = vmatpush1.msra.mxu0 %v341
    %535 = vmatprep.subr.mxu0 0.0
    %536 = vmatpush1.msra.mxu0 %v342
    %537 = vmatprep.subr.mxu0 0.0
    %538 = vmatpush1.msra.mxu0 %v343
    %539 = vmatprep.subr.mxu0 0.0
    %540 = vmatpush1.msra.mxu0 %v344
    %541 = vmatprep.subr.mxu0 0.0
    %542 = vmatpush1.msra.mxu0 %v345
    %543 = vmatprep.subr.mxu0 0.0
    %544 = vmatpush1.msra.mxu0 %v346
    %545 = vmatprep.subr.mxu0 0.0
    %546 = vmatpush1.msra.mxu0 %v347
    %547 = vmatprep.subr.mxu0 0.0
    %548 = vmatpush1.msra.mxu0 %v348
    %549 = vmatprep.subr.mxu0 0.0
    %550 = vmatpush1.msra.mxu0 %v349
    %551 = vmatprep.subr.mxu0 0.0
    %552 = vmatpush1.msra.mxu0 %v350
    %553 = vmatprep.subr.mxu0 0.0
    %554 = vmatpush1.msra.mxu0 %v351
    %555 = vmatprep.subr.mxu0 0.0
    %556 = vmatpush1.msra.mxu0 %v352
    %557 = vmatprep.subr.mxu0 0.0
    %558 = vmatpush1.msra.mxu0 %v353
    %559 = vmatprep.subr.mxu0 0.0
    %560 = vmatpush1.msra.mxu0 %v354
    %561 = vmatprep.subr.mxu0 0.0
    %562 = vmatpush1.msra.mxu0 %v355
    %563 = vmatprep.subr.mxu0 0.0
    %564 = vmatpush1.msra.mxu0 %v356
    %565 = vmatprep.subr.mxu0 0.0
    %566 = vmatpush1.msra.mxu0 0.0
    %567 = vmatprep.subr.mxu0 0.0
    %568 = vmatpush1.msra.mxu0 0.0
    %569 = vmatprep.subr.mxu0 0.0
    %570 = vmatpush1.msra.mxu0 0.0
    %571 = vmatprep.subr.mxu0 0.0
    %572 = vmatpush1.msra.mxu0 0.0
    %573 = vmatprep.subr.mxu0 0.0
    %574 = vmatpush1.msra.mxu0 0.0
    %575 = vmatprep.subr.mxu0 0.0
    %576 = vmatpush1.msra.mxu0 0.0
    %577 = vmatprep.subr.mxu0 0.0
    %578 = vmatpush1.msra.mxu0 0.0
    %579 = vmatprep.subr.mxu0 0.0
    %580 = vmatpush1.msra.mxu0 0.0
    %581 = vmatprep.subr.mxu0 0.0
    %582 = vmatpush1.msra.mxu0 0.0
    %583 = vmatprep.subr.mxu0 0.0
    %584 = vmatpush1.msra.mxu0 0.0
    %585 = vmatprep.subr.mxu0 0.0
    %586 = vmatpush1.msra.mxu0 0.0
    %587 = vmatprep.subr.mxu0 0.0
    %588 = vmatpush1.msra.mxu0 0.0
    %589 = vmatprep.subr.mxu0 0.0
    %590 = vmatpush1.msra.mxu0 0.0
    %591 = vmatprep.subr.mxu0 0.0
    %592 = vmatpush1.msra.mxu0 0.0
    %593 = vmatprep.subr.mxu0 0.0
    %594 = vmatpush1.msra.mxu0 0.0
    %595 = vmatprep.subr.mxu0 0.0
    %596 = vmatpush1.msra.mxu0 0.0
    %597 = vmatprep.mubr.f32.mxu0 0.0
    %598 = vmatmul.mubr.f32.gmra.mrb[0].mxu0 %v531
    %v599 = vpop.f32.mrb[0].mxu0
    %v600 = vadd.f32 0.0, %v599
    %v601 = vpop.f32.mrb[0].mxu0
    %602 = vdwg.mxu0
    %v603 = vadd.f32 %v532, %v600
    %v604 = vmul.f32 %v603, 0.5
    %v605 = vtanh.pop %v604
    %v606 = vadd.f32 %v605, 1.0
    %v607 = vmul.f32 %v606, 0.5
    %v608 = vtanh.pop %v603
    %609 = vrot.lane.b32.xlu0 %v607, 96
    %v610 = vpop.permute.xlu0 %609
    %611 = vrot.lane.b32.xlu0 %v608, 64
    %v612 = vpop.permute.xlu0 %611
    %613 = vrot.lane.b32.xlu0 %v607, 32
    %v614 = vpop.permute.xlu0 %613
    %v615 = vmul.f32 %v610, %v529
    %v616 = vmul.f32 %v607, %v612
    %v617 = vadd.f32 %v615, %v616
    %v618 = vtanh.pop %v617
    %v619 = vmul.f32 %v614, %v618
    %v620 = vld [vmem:[#allocation2 + $0x18] sm:$0xff]
    %621 = vmatprep.subr.mxu0 0.0
    %622 = vmatpush1.msra.mxu0 %v341
    %623 = vmatprep.subr.mxu0 0.0
    %624 = vmatpush1.msra.mxu0 %v342
    %625 = vmatprep.subr.mxu0 0.0
    %626 = vmatpush1.msra.mxu0 %v343
    %627 = vmatprep.subr.mxu0 0.0
    %628 = vmatpush1.msra.mxu0 %v344
    %629 = vmatprep.subr.mxu0 0.0
    %630 = vmatpush1.msra.mxu0 %v345
    %631 = vmatprep.subr.mxu0 0.0
    %632 = vmatpush1.msra.mxu0 %v346
    %633 = vmatprep.subr.mxu0 0.0
    %634 = vmatpush1.msra.mxu0 %v347
    %635 = vmatprep.subr.mxu0 0.0
    %636 = vmatpush1.msra.mxu0 %v348
    %637 = vmatprep.subr.mxu0 0.0
    %638 = vmatpush1.msra.mxu0 %v349
    %639 = vmatprep.subr.mxu0 0.0
    %640 = vmatpush1.msra.mxu0 %v350
    %641 = vmatprep.subr.mxu0 0.0
    %642 = vmatpush1.msra.mxu0 %v351
    %643 = vmatprep.subr.mxu0 0.0
    %644 = vmatpush1.msra.mxu0 %v352
    %645 = vmatprep.subr.mxu0 0.0
    %646 = vmatpush1.msra.mxu0 %v353
    %647 = vmatprep.subr.mxu0 0.0
    %648 = vmatpush1.msra.mxu0 %v354
    %649 = vmatprep.subr.mxu0 0.0
    %650 = vmatpush1.msra.mxu0 %v355
    %651 = vmatprep.subr.mxu0 0.0
    %652 = vmatpush1.msra.mxu0 %v356
    %653 = vmatprep.subr.mxu0 0.0
    %654 = vmatpush1.msra.mxu0 0.0
    %655 = vmatprep.subr.mxu0 0.0
    %656 = vmatpush1.msra.mxu0 0.0
    %657 = vmatprep.subr.mxu0 0.0
    %658 = vmatpush1.msra.mxu0 0.0
    %659 = vmatprep.subr.mxu0 0.0
    %660 = vmatpush1.msra.mxu0 0.0
    %661 = vmatprep.subr.mxu0 0.0
    %662 = vmatpush1.msra.mxu0 0.0
    %663 = vmatprep.subr.mxu0 0.0
    %664 = vmatpush1.msra.mxu0 0.0
    %665 = vmatprep.subr.mxu0 0.0
    %666 = vmatpush1.msra.mxu0 0.0
    %667 = vmatprep.subr.mxu0 0.0
    %668 = vmatpush1.msra.mxu0 0.0
    %669 = vmatprep.subr.mxu0 0.0
    %670 = vmatpush1.msra.mxu0 0.0
    %671 = vmatprep.subr.mxu0 0.0
    %672 = vmatpush1.msra.mxu0 0.0
    %673 = vmatprep.subr.mxu0 0.0
    %674 = vmatpush1.msra.mxu0 0.0
    %675 = vmatprep.subr.mxu0 0.0
    %676 = vmatpush1.msra.mxu0 0.0
    %677 = vmatprep.subr.mxu0 0.0
    %678 = vmatpush1.msra.mxu0 0.0
    %679 = vmatprep.subr.mxu0 0.0
    %680 = vmatpush1.msra.mxu0 0.0
    %681 = vmatprep.subr.mxu0 0.0
    %682 = vmatpush1.msra.mxu0 0.0
    %683 = vmatprep.subr.mxu0 0.0
    %684 = vmatpush1.msra.mxu0 0.0
    %685 = vmatprep.mubr.f32.mxu0 0.0
    %686 = vmatmul.mubr.f32.gmra.mrb[0].mxu0 %v619
    %v687 = vpop.f32.mrb[0].mxu0
    %v688 = vadd.f32 0.0, %v687
    %v689 = vpop.f32.mrb[0].mxu0
    %690 = vdwg.mxu0
    %v691 = vadd.f32 %v620, %v688
    %v692 = vmul.f32 %v691, 0.5
    %v693 = vtanh.pop %v692
    %v694 = vadd.f32 %v693, 1.0
    %v695 = vmul.f32 %v694, 0.5
    %v696 = vtanh.pop %v691
    %697 = vrot.lane.b32.xlu0 %v695, 96
    %v698 = vpop.permute.xlu0 %697
    %699 = vrot.lane.b32.xlu0 %v696, 64
    %v700 = vpop.permute.xlu0 %699
    %701 = vrot.lane.b32.xlu0 %v695, 32
    %v702 = vpop.permute.xlu0 %701
    %v703 = vmul.f32 %v698, %v617
    %v704 = vmul.f32 %v695, %v700
    %v705 = vadd.f32 %v703, %v704
    %v706 = vtanh.pop %v705
    %v707 = vmul.f32 %v702, %v706
    %v708 = vld [vmem:[#allocation2 + $0x20] sm:$0xff]
    %709 = vmatprep.subr.mxu0 0.0
    %710 = vmatpush1.msra.mxu0 %v341
    %711 = vmatprep.subr.mxu0 0.0
    %712 = vmatpush1.msra.mxu0 %v342
    %713 = vmatprep.subr.mxu0 0.0
    %714 = vmatpush1.msra.mxu0 %v343
    %715 = vmatprep.subr.mxu0 0.0
    %716 = vmatpush1.msra.mxu0 %v344
    %717 = vmatprep.subr.mxu0 0.0
    %718 = vmatpush1.msra.mxu0 %v345
    %719 = vmatprep.subr.mxu0 0.0
    %720 = vmatpush1.msra.mxu0 %v346
    %721 = vmatprep.subr.mxu0 0.0
    %722 = vmatpush1.msra.mxu0 %v347
    %723 = vmatprep.subr.mxu0 0.0
    %724 = vmatpush1.msra.mxu0 %v348
    %725 = vmatprep.subr.mxu0 0.0
    %726 = vmatpush1.msra.mxu0 %v349
    %727 = vmatprep.subr.mxu0 0.0
    %728 = vmatpush1.msra.mxu0 %v350
    %729 = vmatprep.subr.mxu0 0.0
    %730 = vmatpush1.msra.mxu0 %v351
    %731 = vmatprep.subr.mxu0 0.0
    %732 = vmatpush1.msra.mxu0 %v352
    %733 = vmatprep.subr.mxu0 0.0
    %734 = vmatpush1.msra.mxu0 %v353
    %735 = vmatprep.subr.mxu0 0.0
    %736 = vmatpush1.msra.mxu0 %v354
    %737 = vmatprep.subr.mxu0 0.0
    %738 = vmatpush1.msra.mxu0 %v355
    %739 = vmatprep.subr.mxu0 0.0
    %740 = vmatpush1.msra.mxu0 %v356
    %741 = vmatprep.subr.mxu0 0.0
    %742 = vmatpush1.msra.mxu0 0.0
    %743 = vmatprep.subr.mxu0 0.0
    %744 = vmatpush1.msra.mxu0 0.0
    %745 = vmatprep.subr.mxu0 0.0
    %746 = vmatpush1.msra.mxu0 0.0
    %747 = vmatprep.subr.mxu0 0.0
    %748 = vmatpush1.msra.mxu0 0.0
    %749 = vmatprep.subr.mxu0 0.0
    %750 = vmatpush1.msra.mxu0 0.0
    %751 = vmatprep.subr.mxu0 0.0
    %752 = vmatpush1.msra.mxu0 0.0
    %753 = vmatprep.subr.mxu0 0.0
    %754 = vmatpush1.msra.mxu0 0.0
    %755 = vmatprep.subr.mxu0 0.0
    %756 = vmatpush1.msra.mxu0 0.0
    %757 = vmatprep.subr.mxu0 0.0
    %758 = vmatpush1.msra.mxu0 0.0
    %759 = vmatprep.subr.mxu0 0.0
    %760 = vmatpush1.msra.mxu0 0.0
    %761 = vmatprep.subr.mxu0 0.0
    %762 = vmatpush1.msra.mxu0 0.0
    %763 = vmatprep.subr.mxu0 0.0
    %764 = vmatpush1.msra.mxu0 0.0
    %765 = vmatprep.subr.mxu0 0.0
    %766 = vmatpush1.msra.mxu0 0.0
    %767 = vmatprep.subr.mxu0 0.0
    %768 = vmatpush1.msra.mxu0 0.0
    %769 = vmatprep.subr.mxu0 0.0
    %770 = vmatpush1.msra.mxu0 0.0
    %771 = vmatprep.subr.mxu0 0.0
    %772 = vmatpush1.msra.mxu0 0.0
    %773 = vmatprep.mubr.f32.mxu0 0.0
    %774 = vmatmul.mubr.f32.gmra.mrb[0].mxu0 %v707
    %v775 = vpop.f32.mrb[0].mxu0
    %v776 = vadd.f32 0.0, %v775
    %v777 = vpop.f32.mrb[0].mxu0
    %778 = vdwg.mxu0
    %v779 = vadd.f32 %v708, %v776
    %v780 = vmul.f32 %v779, 0.5
    %v781 = vtanh.pop %v780
    %v782 = vadd.f32 %v781, 1.0
    %v783 = vmul.f32 %v782, 0.5
    %v784 = vtanh.pop %v779
    %785 = vrot.lane.b32.xlu0 %v783, 96
    %v786 = vpop.permute.xlu0 %785
    %787 = vrot.lane.b32.xlu0 %v784, 64
    %v788 = vpop.permute.xlu0 %787
    %789 = vrot.lane.b32.xlu0 %v783, 32
    %v790 = vpop.permute.xlu0 %789
    %v791 = vmul.f32 %v786, %v705
    %v792 = vmul.f32 %v783, %v788
    %v793 = vadd.f32 %v791, %v792
    %v794 = vtanh.pop %v793
    %v795 = vmul.f32 %v790, %v794
    %v796 = vld [vmem:[#allocation2 + $0x28] sm:$0xff]
    %797 = vmatprep.subr.mxu0 0.0
    %798 = vmatpush1.msra.mxu0 %v341
    %799 = vmatprep.subr.mxu0 0.0
    %800 = vmatpush1.msra.mxu0 %v342
    %801 = vmatprep.subr.mxu0 0.0
    %802 = vmatpush1.msra.mxu0 %v343
    %803 = vmatprep.subr.mxu0 0.0
    %804 = vmatpush1.msra.mxu0 %v344
    %805 = vmatprep.subr.mxu0 0.0
    %806 = vmatpush1.msra.mxu0 %v345
    %807 = vmatprep.subr.mxu0 0.0
    %808 = vmatpush1.msra.mxu0 %v346
    %809 = vmatprep.subr.mxu0 0.0
    %810 = vmatpush1.msra.mxu0 %v347
    %811 = vmatprep.subr.mxu0 0.0
    %812 = vmatpush1.msra.mxu0 %v348
    %813 = vmatprep.subr.mxu0 0.0
    %814 = vmatpush1.msra.mxu0 %v349
    %815 = vmatprep.subr.mxu0 0.0
    %816 = vmatpush1.msra.mxu0 %v350
    %817 = vmatprep.subr.mxu0 0.0
    %818 = vmatpush1.msra.mxu0 %v351
    %819 = vmatprep.subr.mxu0 0.0
    %820 = vmatpush1.msra.mxu0 %v352
    %821 = vmatprep.subr.mxu0 0.0
    %822 = vmatpush1.msra.mxu0 %v353
    %823 = vmatprep.subr.mxu0 0.0
    %824 = vmatpush1.msra.mxu0 %v354
    %825 = vmatprep.subr.mxu0 0.0
    %826 = vmatpush1.msra.mxu0 %v355
    %827 = vmatprep.subr.mxu0 0.0
    %828 = vmatpush1.msra.mxu0 %v356
    %829 = vmatprep.subr.mxu0 0.0
    %830 = vmatpush1.msra.mxu0 0.0
    %831 = vmatprep.subr.mxu0 0.0
    %832 = vmatpush1.msra.mxu0 0.0
    %833 = vmatprep.subr.mxu0 0.0
    %834 = vmatpush1.msra.mxu0 0.0
    %835 = vmatprep.subr.mxu0 0.0
    %836 = vmatpush1.msra.mxu0 0.0
    %837 = vmatprep.subr.mxu0 0.0
    %838 = vmatpush1.msra.mxu0 0.0
    %839 = vmatprep.subr.mxu0 0.0
    %840 = vmatpush1.msra.mxu0 0.0
    %841 = vmatprep.subr.mxu0 0.0
    %842 = vmatpush1.msra.mxu0 0.0
    %843 = vmatprep.subr.mxu0 0.0
    %844 = vmatpush1.msra.mxu0 0.0
    %845 = vmatprep.subr.mxu0 0.0
    %846 = vmatpush1.msra.mxu0 0.0
    %847 = vmatprep.subr.mxu0 0.0
    %848 = vmatpush1.msra.mxu0 0.0
    %849 = vmatprep.subr.mxu0 0.0
    %850 = vmatpush1.msra.mxu0 0.0
    %851 = vmatprep.subr.mxu0 0.0
    %852 = vmatpush1.msra.mxu0 0.0
    %853 = vmatprep.subr.mxu0 0.0
    %854 = vmatpush1.msra.mxu0 0.0
    %855 = vmatprep.subr.mxu0 0.0
    %856 = vmatpush1.msra.mxu0 0.0
    %857 = vmatprep.subr.mxu0 0.0
    %858 = vmatpush1.msra.mxu0 0.0
    %859 = vmatprep.subr.mxu0 0.0
    %860 = vmatpush1.msra.mxu0 0.0
    %861 = vmatprep.mubr.f32.mxu0 0.0
    %862 = vmatmul.mubr.f32.gmra.mrb[0].mxu0 %v795
    %v863 = vpop.f32.mrb[0].mxu0
    %v864 = vadd.f32 0.0, %v863
    %v865 = vpop.f32.mrb[0].mxu0
    %866 = vdwg.mxu0
    %v867 = vadd.f32 %v796, %v864
    %v868 = vmul.f32 %v867, 0.5
    %v869 = vtanh.pop %v868
    %v870 = vadd.f32 %v869, 1.0
    %v871 = vmul.f32 %v870, 0.5
    %v872 = vtanh.pop %v867
    %873 = vrot.lane.b32.xlu0 %v871, 96
    %v874 = vpop.permute.xlu0 %873
    %875 = vrot.lane.b32.xlu0 %v872, 64
    %v876 = vpop.permute.xlu0 %875
    %877 = vrot.lane.b32.xlu0 %v871, 32
    %v878 = vpop.permute.xlu0 %877
    %v879 = vmul.f32 %v874, %v793
    %v880 = vmul.f32 %v871, %v876
    %v881 = vadd.f32 %v879, %v880
    %v882 = vtanh.pop %v881
    %v883 = vmul.f32 %v878, %v882
    %v884 = vld [vmem:[#allocation2 + $0x30] sm:$0xff]
    %885 = vmatprep.subr.mxu0 0.0
    %886 = vmatpush1.msra.mxu0 %v341
    %887 = vmatprep.subr.mxu0 0.0
    %888 = vmatpush1.msra.mxu0 %v342
    %889 = vmatprep.subr.mxu0 0.0
    %890 = vmatpush1.msra.mxu0 %v343
    %891 = vmatprep.subr.mxu0 0.0
    %892 = vmatpush1.msra.mxu0 %v344
    %893 = vmatprep.subr.mxu0 0.0
    %894 = vmatpush1.msra.mxu0 %v345
    %895 = vmatprep.subr.mxu0 0.0
    %896 = vmatpush1.msra.mxu0 %v346
    %897 = vmatprep.subr.mxu0 0.0
    %898 = vmatpush1.msra.mxu0 %v347
    %899 = vmatprep.subr.mxu0 0.0
    %900 = vmatpush1.msra.mxu0 %v348
    %901 = vmatprep.subr.mxu0 0.0
    %902 = vmatpush1.msra.mxu0 %v349
    %903 = vmatprep.subr.mxu0 0.0
    %904 = vmatpush1.msra.mxu0 %v350
    %905 = vmatprep.subr.mxu0 0.0
    %906 = vmatpush1.msra.mxu0 %v351
    %907 = vmatprep.subr.mxu0 0.0
    %908 = vmatpush1.msra.mxu0 %v352
    %909 = vmatprep.subr.mxu0 0.0
    %910 = vmatpush1.msra.mxu0 %v353
    %911 = vmatprep.subr.mxu0 0.0
    %912 = vmatpush1.msra.mxu0 %v354
    %913 = vmatprep.subr.mxu0 0.0
    %914 = vmatpush1.msra.mxu0 %v355
    %915 = vmatprep.subr.mxu0 0.0
    %916 = vmatpush1.msra.mxu0 %v356
    %917 = vmatprep.subr.mxu0 0.0
    %918 = vmatpush1.msra.mxu0 0.0
    %919 = vmatprep.subr.mxu0 0.0
    %920 = vmatpush1.msra.mxu0 0.0
    %921 = vmatprep.subr.mxu0 0.0
    %922 = vmatpush1.msra.mxu0 0.0
    %923 = vmatprep.subr.mxu0 0.0
    %924 = vmatpush1.msra.mxu0 0.0
    %925 = vmatprep.subr.mxu0 0.0
    %926 = vmatpush1.msra.mxu0 0.0
    %927 = vmatprep.subr.mxu0 0.0
    %928 = vmatpush1.msra.mxu0 0.0
    %929 = vmatprep.subr.mxu0 0.0
    %930 = vmatpush1.msra.mxu0 0.0
    %931 = vmatprep.subr.mxu0 0.0
    %932 = vmatpush1.msra.mxu0 0.0
    %933 = vmatprep.subr.mxu0 0.0
    %934 = vmatpush1.msra.mxu0 0.0
    %935 = vmatprep.subr.mxu0 0.0
    %936 = vmatpush1.msra.mxu0 0.0
    %937 = vmatprep.subr.mxu0 0.0
    %938 = vmatpush1.msra.mxu0 0.0
    %939 = vmatprep.subr.mxu0 0.0
    %940 = vmatpush1.msra.mxu0 0.0
    %941 = vmatprep.subr.mxu0 0.0
    %942 = vmatpush1.msra.mxu0 0.0
    %943 = vmatprep.subr.mxu0 0.0
    %944 = vmatpush1.msra.mxu0 0.0
    %945 = vmatprep.subr.mxu0 0.0
    %946 = vmatpush1.msra.mxu0 0.0
    %947 = vmatprep.subr.mxu0 0.0
    %948 = vmatpush1.msra.mxu0 0.0
    %949 = vmatprep.mubr.f32.mxu0 0.0
    %950 = vmatmul.mubr.f32.gmra.mrb[0].mxu0 %v883
    %v951 = vpop.f32.mrb[0].mxu0
    %v952 = vadd.f32 0.0, %v951
    %v953 = vpop.f32.mrb[0].mxu0
    %954 = vdwg.mxu0
    %v955 = vadd.f32 %v884, %v952
    %v956 = vmul.f32 %v955, 0.5
    %v957 = vtanh.pop %v956
    %v958 = vadd.f32 %v957, 1.0
    %v959 = vmul.f32 %v958, 0.5
    %v960 = vtanh.pop %v955
    %961 = vrot.lane.b32.xlu0 %v959, 96
    %v962 = vpop.permute.xlu0 %961
    %963 = vrot.lane.b32.xlu0 %v960, 64
    %v964 = vpop.permute.xlu0 %963
    %965 = vrot.lane.b32.xlu0 %v959, 32
    %v966 = vpop.permute.xlu0 %965
    %v967 = vmul.f32 %v962, %v881
    %v968 = vmul.f32 %v959, %v964
    %v969 = vadd.f32 %v967, %v968
    %v970 = vtanh.pop %v969
    %v971 = vmul.f32 %v966, %v970
    %v972 = vld [vmem:[#allocation2 + $0x38] sm:$0xff]
    %973 = vmatprep.subr.mxu0 0.0
    %974 = vmatpush1.msra.mxu0 %v341
    %975 = vmatprep.subr.mxu0 0.0
    %976 = vmatpush1.msra.mxu0 %v342
    %977 = vmatprep.subr.mxu0 0.0
    %978 = vmatpush1.msra.mxu0 %v343
    %979 = vmatprep.subr.mxu0 0.0
    %980 = vmatpush1.msra.mxu0 %v344
    %981 = vmatprep.subr.mxu0 0.0
    %982 = vmatpush1.msra.mxu0 %v345
    %983 = vmatprep.subr.mxu0 0.0
    %984 = vmatpush1.msra.mxu0 %v346
    %985 = vmatprep.subr.mxu0 0.0
    %986 = vmatpush1.msra.mxu0 %v347
    %987 = vmatprep.subr.mxu0 0.0
    %988 = vmatpush1.msra.mxu0 %v348
    %989 = vmatprep.subr.mxu0 0.0
    %990 = vmatpush1.msra.mxu0 %v349
    %991 = vmatprep.subr.mxu0 0.0
    %992 = vmatpush1.msra.mxu0 %v350
    %993 = vmatprep.subr.mxu0 0.0
    %994 = vmatpush1.msra.mxu0 %v351
    %995 = vmatprep.subr.mxu0 0.0
    %996 = vmatpush1.msra.mxu0 %v352
    %997 = vmatprep.subr.mxu0 0.0
    %998 = vmatpush1.msra.mxu0 %v353
    %999 = vmatprep.subr.mxu0 0.0
    %1000 = vmatpush1.msra.mxu0 %v354
    %1001 = vmatprep.subr.mxu0 0.0
    %1002 = vmatpush1.msra.mxu0 %v355
    %1003 = vmatprep.subr.mxu0 0.0
    %1004 = vmatpush1.msra.mxu0 %v356
    %1005 = vmatprep.subr.mxu0 0.0
    %1006 = vmatpush1.msra.mxu0 0.0
    %1007 = vmatprep.subr.mxu0 0.0
    %1008 = vmatpush1.msra.mxu0 0.0
    %1009 = vmatprep.subr.mxu0 0.0
    %1010 = vmatpush1.msra.mxu0 0.0
    %1011 = vmatprep.subr.mxu0 0.0
    %1012 = vmatpush1.msra.mxu0 0.0
    %1013 = vmatprep.subr.mxu0 0.0
    %1014 = vmatpush1.msra.mxu0 0.0
    %1015 = vmatprep.subr.mxu0 0.0
    %1016 = vmatpush1.msra.mxu0 0.0
    %1017 = vmatprep.subr.mxu0 0.0
    %1018 = vmatpush1.msra.mxu0 0.0
    %1019 = vmatprep.subr.mxu0 0.0
    %1020 = vmatpush1.msra.mxu0 0.0
    %1021 = vmatprep.subr.mxu0 0.0
    %1022 = vmatpush1.msra.mxu0 0.0
    %1023 = vmatprep.subr.mxu0 0.0
    %1024 = vmatpush1.msra.mxu0 0.0
    %1025 = vmatprep.subr.mxu0 0.0
    %1026 = vmatpush1.msra.mxu0 0.0
    %1027 = vmatprep.subr.mxu0 0.0
    %1028 = vmatpush1.msra.mxu0 0.0
    %1029 = vmatprep.subr.mxu0 0.0
    %1030 = vmatpush1.msra.mxu0 0.0
    %1031 = vmatprep.subr.mxu0 0.0
    %1032 = vmatpush1.msra.mxu0 0.0
    %1033 = vmatprep.subr.mxu0 0.0
    %1034 = vmatpush1.msra.mxu0 0.0
    %1035 = vmatprep.subr.mxu0 0.0
    %1036 = vmatpush1.msra.mxu0 0.0
    %1037 = vmatprep.mubr.f32.mxu0 0.0
    %1038 = vmatmul.mubr.f32.gmra.mrb[0].mxu0 %v971
    %v1039 = vpop.f32.mrb[0].mxu0
    %v1040 = vadd.f32 0.0, %v1039
    %v1041 = vpop.f32.mrb[0].mxu0
    %1042 = vdwg.mxu0
    %v1043 = vadd.f32 %v972, %v1040
    %v1044 = vmul.f32 %v1043, 0.5
    %v1045 = vtanh.pop %v1044
    %v1046 = vadd.f32 %v1045, 1.0
    %v1047 = vmul.f32 %v1046, 0.5
    %v1048 = vtanh.pop %v1043
    %1049 = vrot.lane.b32.xlu0 %v1047, 96
    %v1050 = vpop.permute.xlu0 %1049
    %1051 = vrot.lane.b32.xlu0 %v1048, 64
    %v1052 = vpop.permute.xlu0 %1051
    %1053 = vrot.lane.b32.xlu0 %v1047, 32
    %v1054 = vpop.permute.xlu0 %1053
    %v1055 = vmul.f32 %v1050, %v969
    %v1056 = vmul.f32 %v1047, %v1052
    %v1057 = vadd.f32 %v1055, %v1056
    %v1058 = vtanh.pop %v1057
    %v1059 = vmul.f32 %v1054, %v1058
    %v1060 = vld [vmem:[#allocation2 + $0x40] sm:$0xff]
    %1061 = vmatprep.subr.mxu0 0.0
    %1062 = vmatpush1.msra.mxu0 %v341
    %1063 = vmatprep.subr.mxu0 0.0
    %1064 = vmatpush1.msra.mxu0 %v342
    %1065 = vmatprep.subr.mxu0 0.0
    %1066 = vmatpush1.msra.mxu0 %v343
    %1067 = vmatprep.subr.mxu0 0.0
    %1068 = vmatpush1.msra.mxu0 %v344
    %1069 = vmatprep.subr.mxu0 0.0
    %1070 = vmatpush1.msra.mxu0 %v345
    %1071 = vmatprep.subr.mxu0 0.0
    %1072 = vmatpush1.msra.mxu0 %v346
    %1073 = vmatprep.subr.mxu0 0.0
    %1074 = vmatpush1.msra.mxu0 %v347
    %1075 = vmatprep.subr.mxu0 0.0
    %1076 = vmatpush1.msra.mxu0 %v348
    %1077 = vmatprep.subr.mxu0 0.0
    %1078 = vmatpush1.msra.mxu0 %v349
    %1079 = vmatprep.subr.mxu0 0.0
    %1080 = vmatpush1.msra.mxu0 %v350
    %1081 = vmatprep.subr.mxu0 0.0
    %1082 = vmatpush1.msra.mxu0 %v351
    %1083 = vmatprep.subr.mxu0 0.0
    %1084 = vmatpush1.msra.mxu0 %v352
    %1085 = vmatprep.subr.mxu0 0.0
    %1086 = vmatpush1.msra.mxu0 %v353
    %1087 = vmatprep.subr.mxu0 0.0
    %1088 = vmatpush1.msra.mxu0 %v354
    %1089 = vmatprep.subr.mxu0 0.0
    %1090 = vmatpush1.msra.mxu0 %v355
    %1091 = vmatprep.subr.mxu0 0.0
    %1092 = vmatpush1.msra.mxu0 %v356
    %1093 = vmatprep.subr.mxu0 0.0
    %1094 = vmatpush1.msra.mxu0 0.0
    %1095 = vmatprep.subr.mxu0 0.0
    %1096 = vmatpush1.msra.mxu0 0.0
    %1097 = vmatprep.subr.mxu0 0.0
    %1098 = vmatpush1.msra.mxu0 0.0
    %1099 = vmatprep.subr.mxu0 0.0
    %1100 = vmatpush1.msra.mxu0 0.0
    %1101 = vmatprep.subr.mxu0 0.0
    %1102 = vmatpush1.msra.mxu0 0.0
    %1103 = vmatprep.subr.mxu0 0.0
    %1104 = vmatpush1.msra.mxu0 0.0
    %1105 = vmatprep.subr.mxu0 0.0
    %1106 = vmatpush1.msra.mxu0 0.0
    %1107 = vmatprep.subr.mxu0 0.0
    %1108 = vmatpush1.msra.mxu0 0.0
    %1109 = vmatprep.subr.mxu0 0.0
    %1110 = vmatpush1.msra.mxu0 0.0
    %1111 = vmatprep.subr.mxu0 0.0
    %1112 = vmatpush1.msra.mxu0 0.0
    %1113 = vmatprep.subr.mxu0 0.0
    %1114 = vmatpush1.msra.mxu0 0.0
    %1115 = vmatprep.subr.mxu0 0.0
    %1116 = vmatpush1.msra.mxu0 0.0
    %1117 = vmatprep.subr.mxu0 0.0
    %1118 = vmatpush1.msra.mxu0 0.0
    %1119 = vmatprep.subr.mxu0 0.0
    %1120 = vmatpush1.msra.mxu0 0.0
    %1121 = vmatprep.subr.mxu0 0.0
    %1122 = vmatpush1.msra.mxu0 0.0
    %1123 = vmatprep.subr.mxu0 0.0
    %1124 = vmatpush1.msra.mxu0 0.0
    %1125 = vmatprep.mubr.f32.mxu0 0.0
    %1126 = vmatmul.mubr.f32.gmra.mrb[0].mxu0 %v1059
    %v1127 = vpop.f32.mrb[0].mxu0
    %v1128 = vadd.f32 0.0, %v1127
    %v1129 = vpop.f32.mrb[0].mxu0
    %1130 = vdwg.mxu0
    %v1131 = vadd.f32 %v1060, %v1128
    %v1132 = vmul.f32 %v1131, 0.5
    %v1133 = vtanh.pop %v1132
    %v1134 = vadd.f32 %v1133, 1.0
    %v1135 = vmul.f32 %v1134, 0.5
    %v1136 = vtanh.pop %v1131
    %1137 = vrot.lane.b32.xlu0 %v1135, 96
    %v1138 = vpop.permute.xlu0 %1137
    %1139 = vrot.lane.b32.xlu0 %v1136, 64
    %v1140 = vpop.permute.xlu0 %1139
    %1141 = vrot.lane.b32.xlu0 %v1135, 32
    %v1142 = vpop.permute.xlu0 %1141
    %v1143 = vmul.f32 %v1138, %v1057
    %v1144 = vmul.f32 %v1135, %v1140
    %v1145 = vadd.f32 %v1143, %v1144
    %v1146 = vtanh.pop %v1145
    %v1147 = vmul.f32 %v1142, %v1146
    %v1148 = vld [vmem:[#allocation2 + $0x48] sm:$0xff]
    %1149 = vmatprep.subr.mxu0 0.0
    %1150 = vmatpush1.msra.mxu0 %v341
    %1151 = vmatprep.subr.mxu0 0.0
    %1152 = vmatpush1.msra.mxu0 %v342
    %1153 = vmatprep.subr.mxu0 0.0
    %1154 = vmatpush1.msra.mxu0 %v343
    %1155 = vmatprep.subr.mxu0 0.0
    %1156 = vmatpush1.msra.mxu0 %v344
    %1157 = vmatprep.subr.mxu0 0.0
    %1158 = vmatpush1.msra.mxu0 %v345
    %1159 = vmatprep.subr.mxu0 0.0
    %1160 = vmatpush1.msra.mxu0 %v346
    %1161 = vmatprep.subr.mxu0 0.0
    %1162 = vmatpush1.msra.mxu0 %v347
    %1163 = vmatprep.subr.mxu0 0.0
    %1164 = vmatpush1.msra.mxu0 %v348
    %1165 = vmatprep.subr.mxu0 0.0
    %1166 = vmatpush1.msra.mxu0 %v349
    %1167 = vmatprep.subr.mxu0 0.0
    %1168 = vmatpush1.msra.mxu0 %v350
    %1169 = vmatprep.subr.mxu0 0.0
    %1170 = vmatpush1.msra.mxu0 %v351
    %1171 = vmatprep.subr.mxu0 0.0
    %1172 = vmatpush1.msra.mxu0 %v352
    %1173 = vmatprep.subr.mxu0 0.0
    %1174 = vmatpush1.msra.mxu0 %v353
    %1175 = vmatprep.subr.mxu0 0.0
    %1176 = vmatpush1.msra.mxu0 %v354
    %1177 = vmatprep.subr.mxu0 0.0
    %1178 = vmatpush1.msra.mxu0 %v355
    %1179 = vmatprep.subr.mxu0 0.0
    %1180 = vmatpush1.msra.mxu0 %v356
    %1181 = vmatprep.subr.mxu0 0.0
    %1182 = vmatpush1.msra.mxu0 0.0
    %1183 = vmatprep.subr.mxu0 0.0
    %1184 = vmatpush1.msra.mxu0 0.0
    %1185 = vmatprep.subr.mxu0 0.0
    %1186 = vmatpush1.msra.mxu0 0.0
    %1187 = vmatprep.subr.mxu0 0.0
    %1188 = vmatpush1.msra.mxu0 0.0
    %1189 = vmatprep.subr.mxu0 0.0
    %1190 = vmatpush1.msra.mxu0 0.0
    %1191 = vmatprep.subr.mxu0 0.0
    %1192 = vmatpush1.msra.mxu0 0.0
    %1193 = vmatprep.subr.mxu0 0.0
    %1194 = vmatpush1.msra.mxu0 0.0
    %1195 = vmatprep.subr.mxu0 0.0
    %1196 = vmatpush1.msra.mxu0 0.0
    %1197 = vmatprep.subr.mxu0 0.0
    %1198 = vmatpush1.msra.mxu0 0.0
    %1199 = vmatprep.subr.mxu0 0.0
    %1200 = vmatpush1.msra.mxu0 0.0
    %1201 = vmatprep.subr.mxu0 0.0
    %1202 = vmatpush1.msra.mxu0 0.0
    %1203 = vmatprep.subr.mxu0 0.0
    %1204 = vmatpush1.msra.mxu0 0.0
    %1205 = vmatprep.subr.mxu0 0.0
    %1206 = vmatpush1.msra.mxu0 0.0
    %1207 = vmatprep.subr.mxu0 0.0
    %1208 = vmatpush1.msra.mxu0 0.0
    %1209 = vmatprep.subr.mxu0 0.0
    %1210 = vmatpush1.msra.mxu0 0.0
    %1211 = vmatprep.subr.mxu0 0.0
    %1212 = vmatpush1.msra.mxu0 0.0
    %1213 = vmatprep.mubr.f32.mxu0 0.0
    %1214 = vmatmul.mubr.f32.gmra.mrb[0].mxu0 %v1147
    %v1215 = vpop.f32.mrb[0].mxu0
    %v1216 = vadd.f32 0.0, %v1215
    %v1217 = vpop.f32.mrb[0].mxu0
    %1218 = vdwg.mxu0
    %v1219 = vadd.f32 %v1148, %v1216
    %v1220 = vmul.f32 %v1219, 0.5
    %v1221 = vtanh.pop %v1220
    %v1222 = vadd.f32 %v1221, 1.0
    %v1223 = vmul.f32 %v1222, 0.5
    %v1224 = vtanh.pop %v1219
    %1225 = vrot.lane.b32.xlu0 %v1223, 96
    %v1226 = vpop.permute.xlu0 %1225
    %1227 = vrot.lane.b32.xlu0 %v1224, 64
    %v1228 = vpop.permute.xlu0 %1227
    %1229 = vrot.lane.b32.xlu0 %v1223, 32
    %v1230 = vpop.permute.xlu0 %1229
    %v1231 = vmul.f32 %v1226, %v1145
    %v1232 = vmul.f32 %v1223, %v1228
    %v1233 = vadd.f32 %v1231, %v1232
    %v1234 = vtanh.pop %v1233
    %v1235 = vmul.f32 %v1230, %v1234
    %v1236 = vld [vmem:[#allocation2 + $0x50] sm:$0xff]
    %1237 = vmatprep.subr.mxu0 0.0
    %1238 = vmatpush1.msra.mxu0 %v341
    %1239 = vmatprep.subr.mxu0 0.0
    %1240 = vmatpush1.msra.mxu0 %v342
    %1241 = vmatprep.subr.mxu0 0.0
    %1242 = vmatpush1.msra.mxu0 %v343
    %1243 = vmatprep.subr.mxu0 0.0
    %1244 = vmatpush1.msra.mxu0 %v344
    %1245 = vmatprep.subr.mxu0 0.0
    %1246 = vmatpush1.msra.mxu0 %v345
    %1247 = vmatprep.subr.mxu0 0.0
    %1248 = vmatpush1.msra.mxu0 %v346
    %1249 = vmatprep.subr.mxu0 0.0
    %1250 = vmatpush1.msra.mxu0 %v347
    %1251 = vmatprep.subr.mxu0 0.0
    %1252 = vmatpush1.msra.mxu0 %v348
    %1253 = vmatprep.subr.mxu0 0.0
    %1254 = vmatpush1.msra.mxu0 %v349
    %1255 = vmatprep.subr.mxu0 0.0
    %1256 = vmatpush1.msra.mxu0 %v350
    %1257 = vmatprep.subr.mxu0 0.0
    %1258 = vmatpush1.msra.mxu0 %v351
    %1259 = vmatprep.subr.mxu0 0.0
    %1260 = vmatpush1.msra.mxu0 %v352
    %1261 = vmatprep.subr.mxu0 0.0
    %1262 = vmatpush1.msra.mxu0 %v353
    %1263 = vmatprep.subr.mxu0 0.0
    %1264 = vmatpush1.msra.mxu0 %v354
    %1265 = vmatprep.subr.mxu0 0.0
    %1266 = vmatpush1.msra.mxu0 %v355
    %1267 = vmatprep.subr.mxu0 0.0
    %1268 = vmatpush1.msra.mxu0 %v356
    %1269 = vmatprep.subr.mxu0 0.0
    %1270 = vmatpush1.msra.mxu0 0.0
    %1271 = vmatprep.subr.mxu0 0.0
    %1272 = vmatpush1.msra.mxu0 0.0
    %1273 = vmatprep.subr.mxu0 0.0
    %1274 = vmatpush1.msra.mxu0 0.0
    %1275 = vmatprep.subr.mxu0 0.0
    %1276 = vmatpush1.msra.mxu0 0.0
    %1277 = vmatprep.subr.mxu0 0.0
    %1278 = vmatpush1.msra.mxu0 0.0
    %1279 = vmatprep.subr.mxu0 0.0
    %1280 = vmatpush1.msra.mxu0 0.0
    %1281 = vmatprep.subr.mxu0 0.0
    %1282 = vmatpush1.msra.mxu0 0.0
    %1283 = vmatprep.subr.mxu0 0.0
    %1284 = vmatpush1.msra.mxu0 0.0
    %1285 = vmatprep.subr.mxu0 0.0
    %1286 = vmatpush1.msra.mxu0 0.0
    %1287 = vmatprep.subr.mxu0 0.0
    %1288 = vmatpush1.msra.mxu0 0.0
    %1289 = vmatprep.subr.mxu0 0.0
    %1290 = vmatpush1.msra.mxu0 0.0
    %1291 = vmatprep.subr.mxu0 0.0
    %1292 = vmatpush1.msra.mxu0 0.0
    %1293 = vmatprep.subr.mxu0 0.0
    %1294 = vmatpush1.msra.mxu0 0.0
    %1295 = vmatprep.subr.mxu0 0.0
    %1296 = vmatpush1.msra.mxu0 0.0
    %1297 = vmatprep.subr.mxu0 0.0
    %1298 = vmatpush1.msra.mxu0 0.0
    %1299 = vmatprep.subr.mxu0 0.0
    %1300 = vmatpush1.msra.mxu0 0.0
    %1301 = vmatprep.mubr.f32.mxu0 0.0
    %1302 = vmatmul.mubr.f32.gmra.mrb[0].mxu0 %v1235
    %v1303 = vpop.f32.mrb[0].mxu0
    %v1304 = vadd.f32 0.0, %v1303
    %v1305 = vpop.f32.mrb[0].mxu0
    %1306 = vdwg.mxu0
    %v1307 = vadd.f32 %v1236, %v1304
    %v1308 = vmul.f32 %v1307, 0.5
    %v1309 = vtanh.pop %v1308
    %v1310 = vadd.f32 %v1309, 1.0
    %v1311 = vmul.f32 %v1310, 0.5
    %v1312 = vtanh.pop %v1307
    %1313 = vrot.lane.b32.xlu0 %v1311, 96
    %v1314 = vpop.permute.xlu0 %1313
    %1315 = vrot.lane.b32.xlu0 %v1312, 64
    %v1316 = vpop.permute.xlu0 %1315
    %1317 = vrot.lane.b32.xlu0 %v1311, 32
    %v1318 = vpop.permute.xlu0 %1317
    %v1319 = vmul.f32 %v1314, %v1233
    %v1320 = vmul.f32 %v1311, %v1316
    %v1321 = vadd.f32 %v1319, %v1320
    %v1322 = vtanh.pop %v1321
    %v1323 = vmul.f32 %v1318, %v1322
    %v1324 = vld [vmem:[#allocation2 + $0x58] sm:$0xff]
    %1325 = vmatprep.subr.mxu0 0.0
    %1326 = vmatpush1.msra.mxu0 %v341
    %1327 = vmatprep.subr.mxu0 0.0
    %1328 = vmatpush1.msra.mxu0 %v342
    %1329 = vmatprep.subr.mxu0 0.0
    %1330 = vmatpush1.msra.mxu0 %v343
    %1331 = vmatprep.subr.mxu0 0.0
    %1332 = vmatpush1.msra.mxu0 %v344
    %1333 = vmatprep.subr.mxu0 0.0
    %1334 = vmatpush1.msra.mxu0 %v345
    %1335 = vmatprep.subr.mxu0 0.0
    %1336 = vmatpush1.msra.mxu0 %v346
    %1337 = vmatprep.subr.mxu0 0.0
    %1338 = vmatpush1.msra.mxu0 %v347
    %1339 = vmatprep.subr.mxu0 0.0
    %1340 = vmatpush1.msra.mxu0 %v348
    %1341 = vmatprep.subr.mxu0 0.0
    %1342 = vmatpush1.msra.mxu0 %v349
    %1343 = vmatprep.subr.mxu0 0.0
    %1344 = vmatpush1.msra.mxu0 %v350
    %1345 = vmatprep.subr.mxu0 0.0
    %1346 = vmatpush1.msra.mxu0 %v351
    %1347 = vmatprep.subr.mxu0 0.0
    %1348 = vmatpush1.msra.mxu0 %v352
    %1349 = vmatprep.subr.mxu0 0.0
    %1350 = vmatpush1.msra.mxu0 %v353
    %1351 = vmatprep.subr.mxu0 0.0
    %1352 = vmatpush1.msra.mxu0 %v354
    %1353 = vmatprep.subr.mxu0 0.0
    %1354 = vmatpush1.msra.mxu0 %v355
    %1355 = vmatprep.subr.mxu0 0.0
    %1356 = vmatpush1.msra.mxu0 %v356
    %1357 = vmatprep.subr.mxu0 0.0
    %1358 = vmatpush1.msra.mxu0 0.0
    %1359 = vmatprep.subr.mxu0 0.0
    %1360 = vmatpush1.msra.mxu0 0.0
    %1361 = vmatprep.subr.mxu0 0.0
    %1362 = vmatpush1.msra.mxu0 0.0
    %1363 = vmatprep.subr.mxu0 0.0
    %1364 = vmatpush1.msra.mxu0 0.0
    %1365 = vmatprep.subr.mxu0 0.0
    %1366 = vmatpush1.msra.mxu0 0.0
    %1367 = vmatprep.subr.mxu0 0.0
    %1368 = vmatpush1.msra.mxu0 0.0
    %1369 = vmatprep.subr.mxu0 0.0
    %1370 = vmatpush1.msra.mxu0 0.0
    %1371 = vmatprep.subr.mxu0 0.0
    %1372 = vmatpush1.msra.mxu0 0.0
    %1373 = vmatprep.subr.mxu0 0.0
    %1374 = vmatpush1.msra.mxu0 0.0
    %1375 = vmatprep.subr.mxu0 0.0
    %1376 = vmatpush1.msra.mxu0 0.0
    %1377 = vmatprep.subr.mxu0 0.0
    %1378 = vmatpush1.msra.mxu0 0.0
    %1379 = vmatprep.subr.mxu0 0.0
    %1380 = vmatpush1.msra.mxu0 0.0
    %1381 = vmatprep.subr.mxu0 0.0
    %1382 = vmatpush1.msra.mxu0 0.0
    %1383 = vmatprep.subr.mxu0 0.0
    %1384 = vmatpush1.msra.mxu0 0.0
    %1385 = vmatprep.subr.mxu0 0.0
    %1386 = vmatpush1.msra.mxu0 0.0
    %1387 = vmatprep.subr.mxu0 0.0
    %1388 = vmatpush1.msra.mxu0 0.0
    %1389 = vmatprep.mubr.f32.mxu0 0.0
    %1390 = vmatmul.mubr.f32.gmra.mrb[0].mxu0 %v1323
    %v1391 = vpop.f32.mrb[0].mxu0
    %v1392 = vadd.f32 0.0, %v1391
    %v1393 = vpop.f32.mrb[0].mxu0
    %1394 = vdwg.mxu0
    %v1395 = vadd.f32 %v1324, %v1392
    %v1396 = vmul.f32 %v1395, 0.5
    %v1397 = vtanh.pop %v1396
    %v1398 = vadd.f32 %v1397, 1.0
    %v1399 = vmul.f32 %v1398, 0.5
    %v1400 = vtanh.pop %v1395
    %1401 = vrot.lane.b32.xlu0 %v1399, 96
    %v1402 = vpop.permute.xlu0 %1401
    %1403 = vrot.lane.b32.xlu0 %v1400, 64
    %v1404 = vpop.permute.xlu0 %1403
    %1405 = vrot.lane.b32.xlu0 %v1399, 32
    %v1406 = vpop.permute.xlu0 %1405
    %v1407 = vmul.f32 %v1402, %v1321
    %v1408 = vmul.f32 %v1399, %v1404
    %v1409 = vadd.f32 %v1407, %v1408
    %v1410 = vtanh.pop %v1409
    %v1411 = vmul.f32 %v1406, %v1410
    %v1412 = vld [vmem:[#allocation2 + $0x60] sm:$0xff]
    %1413 = vmatprep.subr.mxu0 0.0
    %1414 = vmatpush1.msra.mxu0 %v341
    %1415 = vmatprep.subr.mxu0 0.0
    %1416 = vmatpush1.msra.mxu0 %v342
    %1417 = vmatprep.subr.mxu0 0.0
    %1418 = vmatpush1.msra.mxu0 %v343
    %1419 = vmatprep.subr.mxu0 0.0
    %1420 = vmatpush1.msra.mxu0 %v344
    %1421 = vmatprep.subr.mxu0 0.0
    %1422 = vmatpush1.msra.mxu0 %v345
    %1423 = vmatprep.subr.mxu0 0.0
    %1424 = vmatpush1.msra.mxu0 %v346
    %1425 = vmatprep.subr.mxu0 0.0
    %1426 = vmatpush1.msra.mxu0 %v347
    %1427 = vmatprep.subr.mxu0 0.0
    %1428 = vmatpush1.msra.mxu0 %v348
    %1429 = vmatprep.subr.mxu0 0.0
    %1430 = vmatpush1.msra.mxu0 %v349
    %1431 = vmatprep.subr.mxu0 0.0
    %1432 = vmatpush1.msra.mxu0 %v350
    %1433 = vmatprep.subr.mxu0 0.0
    %1434 = vmatpush1.msra.mxu0 %v351
    %1435 = vmatprep.subr.mxu0 0.0
    %1436 = vmatpush1.msra.mxu0 %v352
    %1437 = vmatprep.subr.mxu0 0.0
    %1438 = vmatpush1.msra.mxu0 %v353
    %1439 = vmatprep.subr.mxu0 0.0
    %1440 = vmatpush1.msra.mxu0 %v354
    %1441 = vmatprep.subr.mxu0 0.0
    %1442 = vmatpush1.msra.mxu0 %v355
    %1443 = vmatprep.subr.mxu0 0.0
    %1444 = vmatpush1.msra.mxu0 %v356
    %1445 = vmatprep.subr.mxu0 0.0
    %1446 = vmatpush1.msra.mxu0 0.0
    %1447 = vmatprep.subr.mxu0 0.0
    %1448 = vmatpush1.msra.mxu0 0.0
    %1449 = vmatprep.subr.mxu0 0.0
    %1450 = vmatpush1.msra.mxu0 0.0
    %1451 = vmatprep.subr.mxu0 0.0
    %1452 = vmatpush1.msra.mxu0 0.0
    %1453 = vmatprep.subr.mxu0 0.0
    %1454 = vmatpush1.msra.mxu0 0.0
    %1455 = vmatprep.subr.mxu0 0.0
    %1456 = vmatpush1.msra.mxu0 0.0
    %1457 = vmatprep.subr.mxu0 0.0
    %1458 = vmatpush1.msra.mxu0 0.0
    %1459 = vmatprep.subr.mxu0 0.0
    %1460 = vmatpush1.msra.mxu0 0.0
    %1461 = vmatprep.subr.mxu0 0.0
    %1462 = vmatpush1.msra.mxu0 0.0
    %1463 = vmatprep.subr.mxu0 0.0
    %1464 = vmatpush1.msra.mxu0 0.0
    %1465 = vmatprep.subr.mxu0 0.0
    %1466 = vmatpush1.msra.mxu0 0.0
    %1467 = vmatprep.subr.mxu0 0.0
    %1468 = vmatpush1.msra.mxu0 0.0
    %1469 = vmatprep.subr.mxu0 0.0
    %1470 = vmatpush1.msra.mxu0 0.0
    %1471 = vmatprep.subr.mxu0 0.0
    %1472 = vmatpush1.msra.mxu0 0.0
    %1473 = vmatprep.subr.mxu0 0.0
    %1474 = vmatpush1.msra.mxu0 0.0
    %1475 = vmatprep.subr.mxu0 0.0
    %1476 = vmatpush1.msra.mxu0 0.0
    %1477 = vmatprep.mubr.f32.mxu0 0.0
    %1478 = vmatmul.mubr.f32.gmra.mrb[0].mxu0 %v1411
    %v1479 = vpop.f32.mrb[0].mxu0
    %v1480 = vadd.f32 0.0, %v1479
    %v1481 = vpop.f32.mrb[0].mxu0
    %1482 = vdwg.mxu0
    %v1483 = vadd.f32 %v1412, %v1480
    %v1484 = vmul.f32 %v1483, 0.5
    %v1485 = vtanh.pop %v1484
    %v1486 = vadd.f32 %v1485, 1.0
    %v1487 = vmul.f32 %v1486, 0.5
    %v1488 = vtanh.pop %v1483
    %1489 = vrot.lane.b32.xlu0 %v1487, 96
    %v1490 = vpop.permute.xlu0 %1489
    %1491 = vrot.lane.b32.xlu0 %v1488, 64
    %v1492 = vpop.permute.xlu0 %1491
    %1493 = vrot.lane.b32.xlu0 %v1487, 32
    %v1494 = vpop.permute.xlu0 %1493
    %v1495 = vmul.f32 %v1490, %v1409
    %v1496 = vmul.f32 %v1487, %v1492
    %v1497 = vadd.f32 %v1495, %v1496
    %v1498 = vtanh.pop %v1497
    %v1499 = vmul.f32 %v1494, %v1498
    %v1500 = vld [vmem:[#allocation2 + $0x68] sm:$0xff]
    %1501 = vmatprep.subr.mxu0 0.0
    %1502 = vmatpush1.msra.mxu0 %v341
    %1503 = vmatprep.subr.mxu0 0.0
    %1504 = vmatpush1.msra.mxu0 %v342
    %1505 = vmatprep.subr.mxu0 0.0
    %1506 = vmatpush1.msra.mxu0 %v343
    %1507 = vmatprep.subr.mxu0 0.0
    %1508 = vmatpush1.msra.mxu0 %v344
    %1509 = vmatprep.subr.mxu0 0.0
    %1510 = vmatpush1.msra.mxu0 %v345
    %1511 = vmatprep.subr.mxu0 0.0
    %1512 = vmatpush1.msra.mxu0 %v346
    %1513 = vmatprep.subr.mxu0 0.0
    %1514 = vmatpush1.msra.mxu0 %v347
    %1515 = vmatprep.subr.mxu0 0.0
    %1516 = vmatpush1.msra.mxu0 %v348
    %1517 = vmatprep.subr.mxu0 0.0
    %1518 = vmatpush1.msra.mxu0 %v349
    %1519 = vmatprep.subr.mxu0 0.0
    %1520 = vmatpush1.msra.mxu0 %v350
    %1521 = vmatprep.subr.mxu0 0.0
    %1522 = vmatpush1.msra.mxu0 %v351
    %1523 = vmatprep.subr.mxu0 0.0
    %1524 = vmatpush1.msra.mxu0 %v352
    %1525 = vmatprep.subr.mxu0 0.0
    %1526 = vmatpush1.msra.mxu0 %v353
    %1527 = vmatprep.subr.mxu0 0.0
    %1528 = vmatpush1.msra.mxu0 %v354
    %1529 = vmatprep.subr.mxu0 0.0
    %1530 = vmatpush1.msra.mxu0 %v355
    %1531 = vmatprep.subr.mxu0 0.0
    %1532 = vmatpush1.msra.mxu0 %v356
    %1533 = vmatprep.subr.mxu0 0.0
    %1534 = vmatpush1.msra.mxu0 0.0
    %1535 = vmatprep.subr.mxu0 0.0
    %1536 = vmatpush1.msra.mxu0 0.0
    %1537 = vmatprep.subr.mxu0 0.0
    %1538 = vmatpush1.msra.mxu0 0.0
    %1539 = vmatprep.subr.mxu0 0.0
    %1540 = vmatpush1.msra.mxu0 0.0
    %1541 = vmatprep.subr.mxu0 0.0
    %1542 = vmatpush1.msra.mxu0 0.0
    %1543 = vmatprep.subr.mxu0 0.0
    %1544 = vmatpush1.msra.mxu0 0.0
    %1545 = vmatprep.subr.mxu0 0.0
    %1546 = vmatpush1.msra.mxu0 0.0
    %1547 = vmatprep.subr.mxu0 0.0
    %1548 = vmatpush1.msra.mxu0 0.0
    %1549 = vmatprep.subr.mxu0 0.0
    %1550 = vmatpush1.msra.mxu0 0.0
    %1551 = vmatprep.subr.mxu0 0.0
    %1552 = vmatpush1.msra.mxu0 0.0
    %1553 = vmatprep.subr.mxu0 0.0
    %1554 = vmatpush1.msra.mxu0 0.0
    %1555 = vmatprep.subr.mxu0 0.0
    %1556 = vmatpush1.msra.mxu0 0.0
    %1557 = vmatprep.subr.mxu0 0.0
    %1558 = vmatpush1.msra.mxu0 0.0
    %1559 = vmatprep.subr.mxu0 0.0
    %1560 = vmatpush1.msra.mxu0 0.0
    %1561 = vmatprep.subr.mxu0 0.0
    %1562 = vmatpush1.msra.mxu0 0.0
    %1563 = vmatprep.subr.mxu0 0.0
    %1564 = vmatpush1.msra.mxu0 0.0
    %1565 = vmatprep.mubr.f32.mxu0 0.0
    %1566 = vmatmul.mubr.f32.gmra.mrb[0].mxu0 %v1499
    %v1567 = vpop.f32.mrb[0].mxu0
    %v1568 = vadd.f32 0.0, %v1567
    %v1569 = vpop.f32.mrb[0].mxu0
    %1570 = vdwg.mxu0
    %v1571 = vadd.f32 %v1500, %v1568
    %v1572 = vmul.f32 %v1571, 0.5
    %v1573 = vtanh.pop %v1572
    %v1574 = vadd.f32 %v1573, 1.0
    %v1575 = vmul.f32 %v1574, 0.5
    %v1576 = vtanh.pop %v1571
    %1577 = vrot.lane.b32.xlu0 %v1575, 96
    %v1578 = vpop.permute.xlu0 %1577
    %1579 = vrot.lane.b32.xlu0 %v1576, 64
    %v1580 = vpop.permute.xlu0 %1579
    %1581 = vrot.lane.b32.xlu0 %v1575, 32
    %v1582 = vpop.permute.xlu0 %1581
    %v1583 = vmul.f32 %v1578, %v1497
    %v1584 = vmul.f32 %v1575, %v1580
    %v1585 = vadd.f32 %v1583, %v1584
    %v1586 = vtanh.pop %v1585
    %v1587 = vmul.f32 %v1582, %v1586
    %v1588 = vld [vmem:[#allocation2 + $0x70] sm:$0xff]
    %1589 = vmatprep.subr.mxu0 0.0
    %1590 = vmatpush1.msra.mxu0 %v341
    %1591 = vmatprep.subr.mxu0 0.0
    %1592 = vmatpush1.msra.mxu0 %v342
    %1593 = vmatprep.subr.mxu0 0.0
    %1594 = vmatpush1.msra.mxu0 %v343
    %1595 = vmatprep.subr.mxu0 0.0
    %1596 = vmatpush1.msra.mxu0 %v344
    %1597 = vmatprep.subr.mxu0 0.0
    %1598 = vmatpush1.msra.mxu0 %v345
    %1599 = vmatprep.subr.mxu0 0.0
    %1600 = vmatpush1.msra.mxu0 %v346
    %1601 = vmatprep.subr.mxu0 0.0
    %1602 = vmatpush1.msra.mxu0 %v347
    %1603 = vmatprep.subr.mxu0 0.0
    %1604 = vmatpush1.msra.mxu0 %v348
    %1605 = vmatprep.subr.mxu0 0.0
    %1606 = vmatpush1.msra.mxu0 %v349
    %1607 = vmatprep.subr.mxu0 0.0
    %1608 = vmatpush1.msra.mxu0 %v350
    %1609 = vmatprep.subr.mxu0 0.0
    %1610 = vmatpush1.msra.mxu0 %v351
    %1611 = vmatprep.subr.mxu0 0.0
    %1612 = vmatpush1.msra.mxu0 %v352
    %1613 = vmatprep.subr.mxu0 0.0
    %1614 = vmatpush1.msra.mxu0 %v353
    %1615 = vmatprep.subr.mxu0 0.0
    %1616 = vmatpush1.msra.mxu0 %v354
    %1617 = vmatprep.subr.mxu0 0.0
    %1618 = vmatpush1.msra.mxu0 %v355
    %1619 = vmatprep.subr.mxu0 0.0
    %1620 = vmatpush1.msra.mxu0 %v356
    %1621 = vmatprep.subr.mxu0 0.0
    %1622 = vmatpush1.msra.mxu0 0.0
    %1623 = vmatprep.subr.mxu0 0.0
    %1624 = vmatpush1.msra.mxu0 0.0
    %1625 = vmatprep.subr.mxu0 0.0
    %1626 = vmatpush1.msra.mxu0 0.0
    %1627 = vmatprep.subr.mxu0 0.0
    %1628 = vmatpush1.msra.mxu0 0.0
    %1629 = vmatprep.subr.mxu0 0.0
    %1630 = vmatpush1.msra.mxu0 0.0
    %1631 = vmatprep.subr.mxu0 0.0
    %1632 = vmatpush1.msra.mxu0 0.0
    %1633 = vmatprep.subr.mxu0 0.0
    %1634 = vmatpush1.msra.mxu0 0.0
    %1635 = vmatprep.subr.mxu0 0.0
    %1636 = vmatpush1.msra.mxu0 0.0
    %1637 = vmatprep.subr.mxu0 0.0
    %1638 = vmatpush1.msra.mxu0 0.0
    %1639 = vmatprep.subr.mxu0 0.0
    %1640 = vmatpush1.msra.mxu0 0.0
    %1641 = vmatprep.subr.mxu0 0.0
    %1642 = vmatpush1.msra.mxu0 0.0
    %1643 = vmatprep.subr.mxu0 0.0
    %1644 = vmatpush1.msra.mxu0 0.0
    %1645 = vmatprep.subr.mxu0 0.0
    %1646 = vmatpush1.msra.mxu0 0.0
    %1647 = vmatprep.subr.mxu0 0.0
    %1648 = vmatpush1.msra.mxu0 0.0
    %1649 = vmatprep.subr.mxu0 0.0
    %1650 = vmatpush1.msra.mxu0 0.0
    %1651 = vmatprep.subr.mxu0 0.0
    %1652 = vmatpush1.msra.mxu0 0.0
    %1653 = vmatprep.mubr.f32.mxu0 0.0
    %1654 = vmatmul.mubr.f32.gmra.mrb[0].mxu0 %v1587
    %v1655 = vpop.f32.mrb[0].mxu0
    %v1656 = vadd.f32 0.0, %v1655
    %v1657 = vpop.f32.mrb[0].mxu0
    %1658 = vdwg.mxu0
    %v1659 = vadd.f32 %v1588, %v1656
    %v1660 = vmul.f32 %v1659, 0.5
    %v1661 = vtanh.pop %v1660
    %v1662 = vadd.f32 %v1661, 1.0
    %v1663 = vmul.f32 %v1662, 0.5
    %v1664 = vtanh.pop %v1659
    %1665 = vrot.lane.b32.xlu0 %v1663, 96
    %v1666 = vpop.permute.xlu0 %1665
    %1667 = vrot.lane.b32.xlu0 %v1664, 64
    %v1668 = vpop.permute.xlu0 %1667
    %1669 = vrot.lane.b32.xlu0 %v1663, 32
    %v1670 = vpop.permute.xlu0 %1669
    %v1671 = vmul.f32 %v1666, %v1585
    %v1672 = vmul.f32 %v1663, %v1668
    %v1673 = vadd.f32 %v1671, %v1672
    %v1674 = vtanh.pop %v1673
    %v1675 = vmul.f32 %v1670, %v1674
    %v1676 = vld [vmem:[#allocation2 + $0x78] sm:$0xff]
    %1677 = vmatprep.subr.mxu0 0.0
    %1678 = vmatpush1.msra.mxu0 %v341
    %1679 = vmatprep.subr.mxu0 0.0
    %1680 = vmatpush1.msra.mxu0 %v342
    %1681 = vmatprep.subr.mxu0 0.0
    %1682 = vmatpush1.msra.mxu0 %v343
    %1683 = vmatprep.subr.mxu0 0.0
    %1684 = vmatpush1.msra.mxu0 %v344
    %1685 = vmatprep.subr.mxu0 0.0
    %1686 = vmatpush1.msra.mxu0 %v345
    %1687 = vmatprep.subr.mxu0 0.0
    %1688 = vmatpush1.msra.mxu0 %v346
    %1689 = vmatprep.subr.mxu0 0.0
    %1690 = vmatpush1.msra.mxu0 %v347
    %1691 = vmatprep.subr.mxu0 0.0
    %1692 = vmatpush1.msra.mxu0 %v348
    %1693 = vmatprep.subr.mxu0 0.0
    %1694 = vmatpush1.msra.mxu0 %v349
    %1695 = vmatprep.subr.mxu0 0.0
    %1696 = vmatpush1.msra.mxu0 %v350
    %1697 = vmatprep.subr.mxu0 0.0
    %1698 = vmatpush1.msra.mxu0 %v351
    %1699 = vmatprep.subr.mxu0 0.0
    %1700 = vmatpush1.msra.mxu0 %v352
    %1701 = vmatprep.subr.mxu0 0.0
    %1702 = vmatpush1.msra.mxu0 %v353
    %1703 = vmatprep.subr.mxu0 0.0
    %1704 = vmatpush1.msra.mxu0 %v354
    %1705 = vmatprep.subr.mxu0 0.0
    %1706 = vmatpush1.msra.mxu0 %v355
    %1707 = vmatprep.subr.mxu0 0.0
    %1708 = vmatpush1.msra.mxu0 %v356
    %1709 = vmatprep.subr.mxu0 0.0
    %1710 = vmatpush1.msra.mxu0 0.0
    %1711 = vmatprep.subr.mxu0 0.0
    %1712 = vmatpush1.msra.mxu0 0.0
    %1713 = vmatprep.subr.mxu0 0.0
    %1714 = vmatpush1.msra.mxu0 0.0
    %1715 = vmatprep.subr.mxu0 0.0
    %1716 = vmatpush1.msra.mxu0 0.0
    %1717 = vmatprep.subr.mxu0 0.0
    %1718 = vmatpush1.msra.mxu0 0.0
    %1719 = vmatprep.subr.mxu0 0.0
    %1720 = vmatpush1.msra.mxu0 0.0
    %1721 = vmatprep.subr.mxu0 0.0
    %1722 = vmatpush1.msra.mxu0 0.0
    %1723 = vmatprep.subr.mxu0 0.0
    %1724 = vmatpush1.msra.mxu0 0.0
    %1725 = vmatprep.subr.mxu0 0.0
    %1726 = vmatpush1.msra.mxu0 0.0
    %1727 = vmatprep.subr.mxu0 0.0
    %1728 = vmatpush1.msra.mxu0 0.0
    %1729 = vmatprep.subr.mxu0 0.0
    %1730 = vmatpush1.msra.mxu0 0.0
    %1731 = vmatprep.subr.mxu0 0.0
    %1732 = vmatpush1.msra.mxu0 0.0
    %1733 = vmatprep.subr.mxu0 0.0
    %1734 = vmatpush1.msra.mxu0 0.0
    %1735 = vmatprep.subr.mxu0 0.0
    %1736 = vmatpush1.msra.mxu0 0.0
    %1737 = vmatprep.subr.mxu0 0.0
    %1738 = vmatpush1.msra.mxu0 0.0
    %1739 = vmatprep.subr.mxu0 0.0
    %1740 = vmatpush1.msra.mxu0 0.0
    %1741 = vmatprep.mubr.f32.mxu0 0.0
    %1742 = vmatmul.mubr.f32.gmra.mrb[0].mxu0 %v1675
    %v1743 = vpop.f32.mrb[0].mxu0
    %v1744 = vadd.f32 0.0, %v1743
    %v1745 = vpop.f32.mrb[0].mxu0
    %1746 = vdwg.mxu0
    %v1747 = vadd.f32 %v1676, %v1744
    %v1748 = vmul.f32 %v1747, 0.5
    %v1749 = vtanh.pop %v1748
    %v1750 = vadd.f32 %v1749, 1.0
    %v1751 = vmul.f32 %v1750, 0.5
    %v1752 = vtanh.pop %v1747
    %1753 = vrot.lane.b32.xlu0 %v1751, 96
    %v1754 = vpop.permute.xlu0 %1753
    %1755 = vrot.lane.b32.xlu0 %v1752, 64
    %v1756 = vpop.permute.xlu0 %1755
    %1757 = vrot.lane.b32.xlu0 %v1751, 32
    %v1758 = vpop.permute.xlu0 %1757
    %v1759 = vmul.f32 %v1754, %v1673
    %v1760 = vmul.f32 %v1751, %v1756
    %v1761 = vadd.f32 %v1759, %v1760
    %v1762 = vtanh.pop %v1761
    %v1763 = vmul.f32 %v1758, %v1762
    %v1764 = vld [vmem:[#allocation6] sm:$0xff]
    %v1765 = vld [vmem:[#allocation6 + $0x8] sm:$0xff]
    %v1766 = vld [vmem:[#allocation6 + $0x10] sm:$0xff]
    %v1767 = vld [vmem:[#allocation6 + $0x18] sm:$0xff]
    %v1768 = vld [vmem:[#allocation6 + $0x20] sm:$0xff]
    %v1769 = vld [vmem:[#allocation6 + $0x28] sm:$0xff]
    %v1770 = vld [vmem:[#allocation6 + $0x30] sm:$0xff]
    %v1771 = vld [vmem:[#allocation6 + $0x38] sm:$0xff]
    %v1772 = vld [vmem:[#allocation6 + $0x40] sm:$0xff]
    %v1773 = vld [vmem:[#allocation6 + $0x48] sm:$0xff]
    %v1774 = vld [vmem:[#allocation6 + $0x50] sm:$0xff]
    %v1775 = vld [vmem:[#allocation6 + $0x58] sm:$0xff]
    %v1776 = vld [vmem:[#allocation6 + $0x60] sm:$0xff]
    %v1777 = vld [vmem:[#allocation6 + $0x68] sm:$0xff]
    %v1778 = vld [vmem:[#allocation6 + $0x70] sm:$0xff]
    %v1779 = vld [vmem:[#allocation6 + $0x78] sm:$0xff]
    %v1780 = vld [vmem:[%s4] sm:$0x1]
    %v1782 = vlaneseq
    %v1783 = vshrl.u32 %v1782, 7
    %v1784 = vsub.s32 0, %v1783
    %v1785 = vrot.slane %v1780, %v1784
    %1787 = vmatprep.subr.mxu0 0.0
    %1788 = vmatpush1.msra.mxu0 %v1764
    %1789 = vmatprep.subr.mxu0 0.0
    %1790 = vmatpush1.msra.mxu0 %v1765
    %1791 = vmatprep.subr.mxu0 0.0
    %1792 = vmatpush1.msra.mxu0 %v1766
    %1793 = vmatprep.subr.mxu0 0.0
    %1794 = vmatpush1.msra.mxu0 %v1767
    %1795 = vmatprep.subr.mxu0 0.0
    %1796 = vmatpush1.msra.mxu0 %v1768
    %1797 = vmatprep.subr.mxu0 0.0
    %1798 = vmatpush1.msra.mxu0 %v1769
    %1799 = vmatprep.subr.mxu0 0.0
    %1800 = vmatpush1.msra.mxu0 %v1770
    %1801 = vmatprep.subr.mxu0 0.0
    %1802 = vmatpush1.msra.mxu0 %v1771
    %1803 = vmatprep.subr.mxu0 0.0
    %1804 = vmatpush1.msra.mxu0 %v1772
    %1805 = vmatprep.subr.mxu0 0.0
    %1806 = vmatpush1.msra.mxu0 %v1773
    %1807 = vmatprep.subr.mxu0 0.0
    %1808 = vmatpush1.msra.mxu0 %v1774
    %1809 = vmatprep.subr.mxu0 0.0
    %1810 = vmatpush1.msra.mxu0 %v1775
    %1811 = vmatprep.subr.mxu0 0.0
    %1812 = vmatpush1.msra.mxu0 %v1776
    %1813 = vmatprep.subr.mxu0 0.0
    %1814 = vmatpush1.msra.mxu0 %v1777
    %1815 = vmatprep.subr.mxu0 0.0
    %1816 = vmatpush1.msra.mxu0 %v1778
    %1817 = vmatprep.subr.mxu0 0.0
    %1818 = vmatpush1.msra.mxu0 %v1779
    %1819 = vmatprep.subr.mxu0 0.0
    %1820 = vmatpush1.msra.mxu0 0.0
    %1821 = vmatprep.subr.mxu0 0.0
    %1822 = vmatpush1.msra.mxu0 0.0
    %1823 = vmatprep.subr.mxu0 0.0
    %1824 = vmatpush1.msra.mxu0 0.0
    %1825 = vmatprep.subr.mxu0 0.0
    %1826 = vmatpush1.msra.mxu0 0.0
    %1827 = vmatprep.subr.mxu0 0.0
    %1828 = vmatpush1.msra.mxu0 0.0
    %1829 = vmatprep.subr.mxu0 0.0
    %1830 = vmatpush1.msra.mxu0 0.0
    %1831 = vmatprep.subr.mxu0 0.0
    %1832 = vmatpush1.msra.mxu0 0.0
    %1833 = vmatprep.subr.mxu0 0.0
    %1834 = vmatpush1.msra.mxu0 0.0
    %1835 = vmatprep.subr.mxu0 0.0
    %1836 = vmatpush1.msra.mxu0 0.0
    %1837 = vmatprep.subr.mxu0 0.0
    %1838 = vmatpush1.msra.mxu0 0.0
    %1839 = vmatprep.subr.mxu0 0.0
    %1840 = vmatpush1.msra.mxu0 0.0
    %1841 = vmatprep.subr.mxu0 0.0
    %1842 = vmatpush1.msra.mxu0 0.0
    %1843 = vmatprep.subr.mxu0 0.0
    %1844 = vmatpush1.msra.mxu0 0.0
    %1845 = vmatprep.subr.mxu0 0.0
    %1846 = vmatpush1.msra.mxu0 0.0
    %1847 = vmatprep.subr.mxu0 0.0
    %1848 = vmatpush1.msra.mxu0 0.0
    %1849 = vmatprep.subr.mxu0 0.0
    %1850 = vmatpush1.msra.mxu0 0.0
    %1851 = vmatprep.mubr.f32.mxu0 0.0
    %1852 = vmatmul.mubr.f32.gmra.mrb[0].mxu0 %v1763
    %v1853 = vpop.f32.mrb[0].mxu0
    %v1854 = vadd.f32 %v1785, %v1853
    %v1855 = vpop.f32.mrb[0].mxu0
    %1856 = vdwg.mxu0
    %1857 = vst [vmem:[#allocation8] sm:$0xff] %v1854
    // Predicated region
    $region30: #{tpu_custom_call.1} parent=1 // pred_check
      _
    $region31: #{tpu_custom_call.1} parent=1 // pred_check_branch
      %1859 = sbr.rel (0) target = $region33
    $region32: #{tpu_custom_call.1} parent=1 // pred_region
      %s1861 = ssub.s32 128, 128
      %1862 = vsyncadd [#allocation5], %s1861
      %s1864 = sshll.u32 [#allocation8], 4
      %s1865 = int_to_ptr.vmem [resolvable:$true] %s1864
      %1867 = dma.vmem_to_hbm [thread:$0]  %s1865, 128, %s5, [#allocation5]
    $region33: #{tpu_custom_call.1} parent=1 // pred_fallthru
      _
    // Predicated region
    $region34: #{tpu_custom_call.1} parent=1 // pred_check
      _
    $region35: #{tpu_custom_call.1} parent=1 // pred_check_branch
      %1869 = sbr.rel (0) target = $region37
    $region36: #{tpu_custom_call.1} parent=1 // pred_region
      %1870 = dma.done [#allocation5], 128
    $region37: #{tpu_custom_call.1} parent=1 // pred_fallthru
      _
    %1871 = vsyncpa [#allocation4], 1
    %1872 = vsyncpa [#allocation7], 1
    %1873 = vsyncpa [#allocation5], 1

</llo_original>
